<compile_context>
chip_gen: v5e
topology: v5e:2x2
jax: 0.10.0
libtpu: 0.0.40
codegen_flags: <defaults>
</compile_context>

<pallas_src>
import functools
import math

import jax
import jax.numpy as jnp
from jax.experimental import pallas as pl
from jax.experimental.pallas import tpu as pltpu


def _layer_norm(x, gamma, beta, eps=1e-5):
    # x: (N, E) f32; gamma/beta: (1, E) f32
    mu = jnp.mean(x, axis=-1, keepdims=True)
    xc = x - mu
    var = jnp.mean(xc * xc, axis=-1, keepdims=True)
    return xc * jax.lax.rsqrt(var + eps) * gamma + beta


def _encoder_block_kernel(
    x_ref,       # (B, S, E)      f32
    wqkv_ref,    # (H, E, 3*Dh)   f32  per-head fused [Q|K|V] proj, Q pre-scaled by 1/sqrt(Dh)
    bqkv_ref,    # (H, 1, 3*Dh)   f32  per-head fused bias, Q part pre-scaled
    wo_ref,      # (H, Dh, E)     f32  out_proj.weight.T split per head (row blocks)
    bo_ref,      # (1, E)         f32
    g1_ref,      # (1, E)         f32  LayerNorm1 weight
    be1_ref,     # (1, E)         f32  LayerNorm1 bias
    w1_ref,      # (E, D)         f32  ff[0].weight.T
    b1_ref,      # (1, D)         f32
    w2_ref,      # (D, E)         f32  ff[3].weight.T
    b2_ref,      # (1, E)         f32
    g2_ref,      # (1, E)         f32  LayerNorm2 weight
    be2_ref,     # (1, E)         f32  LayerNorm2 bias
    o_ref,       # (B, S, E)
    *,
    num_heads: int,
):
    B, S, E = x_ref.shape
    H = num_heads
    Dh = E // H
    N = B * S
    BH = B * H

    x = x_ref[...].astype(jnp.float32)            # (B, S, E)
    x2d = x.reshape(N, E)                         # leading-dim collapse only (free)

    # ---------------- self-attention: heads on a batch axis end-to-end ----------------
    # Replicate tokens over heads along a *leading* axis (no lane/sublane relayout).
    xh = jnp.broadcast_to(x[:, None], (B, H, S, E)).reshape(BH, S, E)          # (BH, S, E)
    w_qkv = jnp.broadcast_to(wqkv_ref[...][None], (B, H, E, 3 * Dh)).reshape(BH, E, 3 * Dh)
    b_qkv = jnp.broadcast_to(bqkv_ref[...][None], (B, H, 1, 3 * Dh)).reshape(BH, 1, 3 * Dh)

    # One batched MXU matmul gives Q/K/V already in head-batched layout; the 1/sqrt(Dh)
    # scale is pre-folded into the Q columns host-side.
    qkv = jnp.einsum("nse,nef->nsf", xh, w_qkv,
                     preferred_element_type=jnp.float32) + b_qkv               # (BH, S, 3*Dh)
    q = qkv[..., 0 * Dh:1 * Dh]                                                # (BH, S, Dh)
    k = qkv[..., 1 * Dh:2 * Dh]
    v = qkv[..., 2 * Dh:3 * Dh]

    # Scores: batched dot_general, K consumed transposed (no explicit .T).  All f32.
    s = jnp.einsum("nqd,nkd->nqk", q, k, preferred_element_type=jnp.float32)   # (BH, S, S)
    s = s - jnp.max(s, axis=-1, keepdims=True)
    p = jnp.exp(s)
    p = p / jnp.sum(p, axis=-1, keepdims=True)      # exact divide (accuracy; cost ~0 here)

    o_h = jnp.einsum("nqk,nkd->nqd", p, v, preferred_element_type=jnp.float32)  # (BH, S, Dh)

    # Out-projection with per-head weight blocks; heads merge via a cheap leading-axis sum.
    wo = jnp.broadcast_to(wo_ref[...][None], (B, H, Dh, E)).reshape(BH, Dh, E)
    proj = jnp.einsum("nqd,nde->nqe", o_h, wo,
                      preferred_element_type=jnp.float32)                      # (BH, S, E)
    attn = jnp.sum(proj.reshape(B, H, S, E), axis=1).reshape(N, E) + bo_ref[...]

    # ---------------- residual + LayerNorm1 (post-norm) ----------------
    h1 = _layer_norm(x2d + attn, g1_ref[...], be1_ref[...])

    # ---------------- feed-forward ----------------
    ff = jnp.dot(h1, w1_ref[...], preferred_element_type=jnp.float32) + b1_ref[...]
    ff = jnp.maximum(ff, 0.0)
    ff = jnp.dot(ff, w2_ref[...], preferred_element_type=jnp.float32) + b2_ref[...]

    # ---------------- residual + LayerNorm2 ----------------
    out = _layer_norm(h1 + ff, g2_ref[...], be2_ref[...])
    o_ref[...] = out.reshape(B, S, E).astype(o_ref.dtype)


def prepare_params(params, num_heads):
    """One-time host-side parameter preparation (amortized; not a per-call wrapper op):
    split the fused QKV projection into per-head (E, 3*Dh) blocks with 1/sqrt(Dh) folded
    into the Q part, and split out_proj.weight.T into per-head (Dh, E) row blocks.
    Everything stays f32 (weights are ~50 KiB total; bf16 saves nothing measurable and
    costs accuracy at these shapes)."""
    E = params["wo"].shape[0]
    H = num_heads
    Dh = E // H
    scale = 1.0 / math.sqrt(Dh)

    wqkv = params["wqkv"]                           # (E, 3E), already transposed (x @ W)
    bqkv = params["bqkv"].reshape(3 * E)            # (3E,)

    wq = wqkv[:, 0 * E:1 * E].reshape(E, H, Dh) * scale
    wk = wqkv[:, 1 * E:2 * E].reshape(E, H, Dh)
    wv = wqkv[:, 2 * E:3 * E].reshape(E, H, Dh)
    w_qkv_h = jnp.concatenate(
        [jnp.transpose(wq, (1, 0, 2)),
         jnp.transpose(wk, (1, 0, 2)),
         jnp.transpose(wv, (1, 0, 2))], axis=-1)    # (H, E, 3*Dh)

    bq = bqkv[0 * E:1 * E].reshape(H, Dh) * scale
    bk = bqkv[1 * E:2 * E].reshape(H, Dh)
    bv = bqkv[2 * E:3 * E].reshape(H, Dh)
    b_qkv_h = jnp.concatenate([bq, bk, bv], axis=-1)[:, None, :]   # (H, 1, 3*Dh)

    return {
        "w_qkv_h": w_qkv_h.astype(jnp.float32),
        "b_qkv_h": b_qkv_h.astype(jnp.float32),
        "wo_h": params["wo"].reshape(H, Dh, E).astype(jnp.float32),
        "bo": params["bo"],
        "ln1_g": params["ln1_g"], "ln1_b": params["ln1_b"],
        "w1": params["w1"].astype(jnp.float32), "b1": params["b1"],
        "w2": params["w2"].astype(jnp.float32), "b2": params["b2"],
        "ln2_g": params["ln2_g"], "ln2_b": params["ln2_b"],
    }


def transformer_encoder_block(x, prepared, num_heads):
    """x: (B, S, E) float32. prepared: output of prepare_params()."""
    B, S, E = x.shape
    assert E % num_heads == 0, "embed_dim must be divisible by num_heads"
    H = num_heads
    Dh = E // H
    D = prepared["w1"].shape[1]
    N = B * S
    BH = B * H

    flops = (
        2 * BH * S * E * 3 * Dh                   # batched per-head QKV projection
        + 2 * 2 * BH * S * S * Dh                 # QK^T + PV
        + 2 * BH * S * Dh * E                     # per-head out projection
        + 4 * N * E * D                           # feed-forward
        + 12 * N * E                              # residuals / layer norms (rough)
    )
    transcendentals = BH * S * S + 2 * N          # exp + rsqrt (rough)
    bytes_accessed = (
        2 * N * E * 4                                             # activations in + out
        + (H * E * 3 * Dh + E * E + 2 * E * D) * 4                # f32 weights
        + (H * 3 * Dh + 6 * E + D) * 4                            # biases + LayerNorm params
    )

    kernel = functools.partial(_encoder_block_kernel, num_heads=num_heads)
    vmem_spec = pl.BlockSpec(memory_space=pltpu.MemorySpace.VMEM)  # whole array, VMEM-resident

    # Tiny shapes: single grid step — every operand resident in VMEM exactly once
    # (no double-buffering of grid-invariant weights, no per-step pipeline overhead).
    return pl.pallas_call(
        kernel,
        out_shape=jax.ShapeDtypeStruct((B, S, E), x.dtype),
        in_specs=[vmem_spec] * 13,
        out_specs=vmem_spec,
        cost_estimate=pl.CostEstimate(
            flops=flops,
            transcendentals=transcendentals,
            bytes_accessed=bytes_accessed,
        ),
        compiler_params=pltpu.CompilerParams(
            # True footprint is < 1 MiB; 2 MiB documents the budget with headroom and
            # is well under the v7x 32 MiB default scoped limit.
            vmem_limit_bytes=2 * 1024 * 1024,
        ),
    )(
        x,
        prepared["w_qkv_h"], prepared["b_qkv_h"],
        prepared["wo_h"], prepared["bo"],
        prepared["ln1_g"], prepared["ln1_b"],
        prepared["w1"], prepared["b1"],
        prepared["w2"], prepared["b2"],
        prepared["ln2_g"], prepared["ln2_b"],
    )


def _reference(x, params, num_heads):
    """Pure-JAX f32 reference (mirrors PyTorch post-norm eval semantics)."""
    B, S, E = x.shape
    Dh = E // num_heads
    scale = 1.0 / math.sqrt(Dh)

    def ln(v, g, b, eps=1e-5):
        mu = jnp.mean(v, -1, keepdims=True)
        var = jnp.mean((v - mu) ** 2, -1, keepdims=True)
        return (v - mu) / jnp.sqrt(var + eps) * g + b

    qkv = x @ params["wqkv"] + params["bqkv"]
    q, k, v = jnp.split(qkv, 3, axis=-1)
    q = q.reshape(B, S, num_heads, Dh).transpose(0, 2, 1, 3)
    k = k.reshape(B, S, num_heads, Dh).transpose(0, 2, 1, 3)
    v = v.reshape(B, S, num_heads, Dh).transpose(0, 2, 1, 3)
    s = jnp.einsum("bhqd,bhkd->bhqk", q, k) * scale
    p = jax.nn.softmax(s, axis=-1)
    attn = jnp.einsum("bhqk,bhkd->bhqd", p, v).transpose(0, 2, 1, 3).reshape(B, S, E)
    attn = attn @ params["wo"] + params["bo"]
    h1 = ln(x + attn, params["ln1_g"], params["ln1_b"])
    ff = jnp.maximum(h1 @ params["w1"] + params["b1"], 0.0) @ params["w2"] + params["b2"]
    return ln(h1 + ff, params["ln2_g"], params["ln2_b"])


if __name__ == "__main__":
    # Small shapes consistent with the module: batch=2, seq=8, embed=32, heads=4,
    # backbone=4*embed=128.
    B, S, E, H = 2, 8, 32, 4
    D = 4 * E

    key = jax.random.PRNGKey(0)
    keys = jax.random.split(key, 8)

    x = jax.random.normal(keys[0], (B, S, E), dtype=jnp.float32)

    # Synthetic f32 parameters; weights stored transposed so the kernel computes x @ W.
    params = {
        "wqkv": 0.1 * jax.random.normal(keys[1], (E, 3 * E), dtype=jnp.float32),
        "bqkv": 0.01 * jax.random.normal(keys[2], (1, 3 * E), dtype=jnp.float32),
        "wo": 0.1 * jax.random.normal(keys[3], (E, E), dtype=jnp.float32),
        "bo": 0.01 * jax.random.normal(keys[4], (1, E), dtype=jnp.float32),
        "ln1_g": jnp.ones((1, E), dtype=jnp.float32),
        "ln1_b": jnp.zeros((1, E), dtype=jnp.float32),
        "w1": 0.1 * jax.random.normal(keys[5], (E, D), dtype=jnp.float32),
        "b1": 0.01 * jax.random.normal(keys[6], (1, D), dtype=jnp.float32),
        "w2": 0.1 * jax.random.normal(keys[7], (D, E), dtype=jnp.float32),
        "b2": jnp.zeros((1, E), dtype=jnp.float32),
        "ln2_g": jnp.ones((1, E), dtype=jnp.float32),
        "ln2_b": jnp.zeros((1, E), dtype=jnp.float32),
    }

    prepared = prepare_params(params, num_heads=H)

    out = transformer_encoder_block(x, prepared, num_heads=H)
    out = jax.block_until_ready(out)

    ref = _reference(x, params, num_heads=H)
    assert out.shape == (B, S, E)
    # f32 end-to-end; tolerance covers MXU internal matmul precision passes.
    assert jnp.allclose(out, ref, atol=2e-2, rtol=2e-2), (
        f"max abs diff {jnp.max(jnp.abs(out - ref))}"
    )

    print("KERNEL_OK")
</pallas_src>

<mosaic_0001>
module attributes {stable_mosaic.version = 11 : i64} {
  func.func @_encoder_block_kernel(%arg0: memref<2x8x32xf32, #tpu.memory_space<vmem>>, %arg1: memref<4x32x24xf32, #tpu.memory_space<vmem>>, %arg2: memref<4x1x24xf32, #tpu.memory_space<vmem>>, %arg3: memref<4x8x32xf32, #tpu.memory_space<vmem>>, %arg4: memref<1x32xf32, #tpu.memory_space<vmem>>, %arg5: memref<1x32xf32, #tpu.memory_space<vmem>>, %arg6: memref<1x32xf32, #tpu.memory_space<vmem>>, %arg7: memref<32x128xf32, #tpu.memory_space<vmem>>, %arg8: memref<1x128xf32, #tpu.memory_space<vmem>>, %arg9: memref<128x32xf32, #tpu.memory_space<vmem>>, %arg10: memref<1x32xf32, #tpu.memory_space<vmem>>, %arg11: memref<1x32xf32, #tpu.memory_space<vmem>>, %arg12: memref<1x32xf32, #tpu.memory_space<vmem>>, %arg13: memref<2x8x32xf32, #tpu.memory_space<vmem>>) attributes {dimension_semantics = [], scalar_prefetch = 0 : i64, scratch_operands = 0 : i64, tpu.core_type = #tpu.core_type<tc>} {
    %c0 = arith.constant 0 : index
    %c0_0 = arith.constant 0 : index
    %c0_1 = arith.constant 0 : index
    %0 = vector.load %arg0[%c0, %c0_0, %c0_1] : memref<2x8x32xf32, #tpu.memory_space<vmem>>, vector<2x8x32xf32>
    %1 = vector.shape_cast %0 : vector<2x8x32xf32> to vector<16x32xf32>
    %2 = vector.shape_cast %0 : vector<2x8x32xf32> to vector<2x1x8x32xf32>
    %3 = vector.shape_cast %2 : vector<2x1x8x32xf32> to vector<2x1x8x32xf32>
    %4 = vector.broadcast %3 : vector<2x1x8x32xf32> to vector<2x4x8x32xf32>
    %5 = vector.shape_cast %4 : vector<2x4x8x32xf32> to vector<8x8x32xf32>
    %c0_2 = arith.constant 0 : index
    %c0_3 = arith.constant 0 : index
    %c0_4 = arith.constant 0 : index
    %6 = vector.load %arg1[%c0_2, %c0_3, %c0_4] : memref<4x32x24xf32, #tpu.memory_space<vmem>>, vector<4x32x24xf32>
    %7 = vector.shape_cast %6 : vector<4x32x24xf32> to vector<1x4x32x24xf32>
    %8 = vector.shape_cast %7 : vector<1x4x32x24xf32> to vector<1x4x32x24xf32>
    %9 = vector.broadcast %8 : vector<1x4x32x24xf32> to vector<2x4x32x24xf32>
    %10 = vector.shape_cast %9 : vector<2x4x32x24xf32> to vector<8x32x24xf32>
    %c0_5 = arith.constant 0 : index
    %c0_6 = arith.constant 0 : index
    %c0_7 = arith.constant 0 : index
    %11 = vector.load %arg2[%c0_5, %c0_6, %c0_7] : memref<4x1x24xf32, #tpu.memory_space<vmem>>, vector<4x1x24xf32>
    %12 = vector.shape_cast %11 : vector<4x1x24xf32> to vector<1x4x1x24xf32>
    %13 = vector.shape_cast %12 : vector<1x4x1x24xf32> to vector<1x4x1x24xf32>
    %14 = vector.broadcast %13 : vector<1x4x1x24xf32> to vector<2x4x1x24xf32>
    %15 = vector.shape_cast %14 : vector<2x4x1x24xf32> to vector<8x1x24xf32>
    "tpu.trace_start"() <{level = 10 : i32, message = "nse,nef->nsf"}> : () -> ()
    %cst = arith.constant dense<0.000000e+00> : vector<8x8x24xf32>
    %16 = tpu.matmul %5, %10, %cst {dimension_numbers = #tpu.dot_dimension_numbers<[2], [1], [1], [2], [0, 0, 0, 1, 1, 2], [0], [0]>} : vector<8x8x32xf32>, vector<8x32x24xf32>, vector<8x8x24xf32> -> vector<8x8x24xf32>
    "tpu.trace_stop"() : () -> ()
    %17 = vector.broadcast %15 : vector<8x1x24xf32> to vector<8x8x24xf32>
    %18 = arith.addf %16, %17 : vector<8x8x24xf32>
    %19 = vector.extract_strided_slice %18 {offsets = [0, 0, 0], sizes = [8, 8, 8], strides = [1, 1, 1]} : vector<8x8x24xf32> to vector<8x8x8xf32>
    %20 = vector.extract_strided_slice %18 {offsets = [0, 0, 8], sizes = [8, 8, 8], strides = [1, 1, 1]} : vector<8x8x24xf32> to vector<8x8x8xf32>
    %21 = vector.extract_strided_slice %18 {offsets = [0, 0, 16], sizes = [8, 8, 8], strides = [1, 1, 1]} : vector<8x8x24xf32> to vector<8x8x8xf32>
    "tpu.trace_start"() <{level = 10 : i32, message = "nqd,nkd->nqk"}> : () -> ()
    %cst_8 = arith.constant dense<0.000000e+00> : vector<8x8x8xf32>
    %22 = tpu.matmul %19, %20, %cst_8 {dimension_numbers = #tpu.dot_dimension_numbers<[2], [2], [1], [1], [0, 0, 0, 1, 1, 1], [0], [0]>} : vector<8x8x8xf32>, vector<8x8x8xf32>, vector<8x8x8xf32> -> vector<8x8x8xf32>
    "tpu.trace_stop"() : () -> ()
    %cst_9 = arith.constant dense<0xFF800000> : vector<8x8xf32>
    %23 = vector.multi_reduction <maximumf>, %22, %cst_9 [2] : vector<8x8x8xf32> to vector<8x8xf32>
    %24 = vector.shape_cast %23 : vector<8x8xf32> to vector<8x8x1xf32>
    %25 = vector.broadcast %24 : vector<8x8x1xf32> to vector<8x8x8xf32>
    %26 = arith.subf %22, %25 : vector<8x8x8xf32>
    %27 = math.exp %26 : vector<8x8x8xf32>
    %cst_10 = arith.constant dense<0.000000e+00> : vector<8x8xf32>
    %28 = vector.multi_reduction <add>, %27, %cst_10 [2] : vector<8x8x8xf32> to vector<8x8xf32>
    %29 = vector.shape_cast %28 : vector<8x8xf32> to vector<8x8x1xf32>
    %30 = vector.broadcast %29 : vector<8x8x1xf32> to vector<8x8x8xf32>
    %31 = arith.divf %27, %30 : vector<8x8x8xf32>
    "tpu.trace_start"() <{level = 10 : i32, message = "nqk,nkd->nqd"}> : () -> ()
    %cst_11 = arith.constant dense<0.000000e+00> : vector<8x8x8xf32>
    %32 = tpu.matmul %31, %21, %cst_11 {dimension_numbers = #tpu.dot_dimension_numbers<[2], [1], [1], [2], [0, 0, 0, 1, 1, 2], [0], [0]>} : vector<8x8x8xf32>, vector<8x8x8xf32>, vector<8x8x8xf32> -> vector<8x8x8xf32>
    "tpu.trace_stop"() : () -> ()
    %c0_12 = arith.constant 0 : index
    %c0_13 = arith.constant 0 : index
    %c0_14 = arith.constant 0 : index
    %33 = vector.load %arg3[%c0_12, %c0_13, %c0_14] : memref<4x8x32xf32, #tpu.memory_space<vmem>>, vector<4x8x32xf32>
    %34 = vector.shape_cast %33 : vector<4x8x32xf32> to vector<1x4x8x32xf32>
    %35 = vector.shape_cast %34 : vector<1x4x8x32xf32> to vector<1x4x8x32xf32>
    %36 = vector.broadcast %35 : vector<1x4x8x32xf32> to vector<2x4x8x32xf32>
    %37 = vector.shape_cast %36 : vector<2x4x8x32xf32> to vector<8x8x32xf32>
    "tpu.trace_start"() <{level = 10 : i32, message = "nqd,nde->nqe"}> : () -> ()
    %cst_15 = arith.constant dense<0.000000e+00> : vector<8x8x32xf32>
    %38 = tpu.matmul %32, %37, %cst_15 {dimension_numbers = #tpu.dot_dimension_numbers<[2], [1], [1], [2], [0, 0, 0, 1, 1, 2], [0], [0]>} : vector<8x8x8xf32>, vector<8x8x32xf32>, vector<8x8x32xf32> -> vector<8x8x32xf32>
    "tpu.trace_stop"() : () -> ()
    %39 = vector.shape_cast %38 : vector<8x8x32xf32> to vector<2x4x8x32xf32>
    %cst_16 = arith.constant dense<0.000000e+00> : vector<2x8x32xf32>
    %40 = vector.multi_reduction <add>, %39, %cst_16 [1] : vector<2x4x8x32xf32> to vector<2x8x32xf32>
    %41 = vector.shape_cast %40 : vector<2x8x32xf32> to vector<16x32xf32>
    %c0_17 = arith.constant 0 : index
    %c0_18 = arith.constant 0 : index
    %42 = vector.load %arg4[%c0_17, %c0_18] : memref<1x32xf32, #tpu.memory_space<vmem>>, vector<1x32xf32>
    %43 = vector.broadcast %42 : vector<1x32xf32> to vector<16x32xf32>
    %44 = arith.addf %41, %43 : vector<16x32xf32>
    %45 = arith.addf %1, %44 : vector<16x32xf32>
    %c0_19 = arith.constant 0 : index
    %c0_20 = arith.constant 0 : index
    %46 = vector.load %arg5[%c0_19, %c0_20] : memref<1x32xf32, #tpu.memory_space<vmem>>, vector<1x32xf32>
    %c0_21 = arith.constant 0 : index
    %c0_22 = arith.constant 0 : index
    %47 = vector.load %arg6[%c0_21, %c0_22] : memref<1x32xf32, #tpu.memory_space<vmem>>, vector<1x32xf32>
    %cst_23 = arith.constant dense<0.000000e+00> : vector<16xf32>
    %48 = vector.multi_reduction <add>, %45, %cst_23 [1] : vector<16x32xf32> to vector<16xf32>
    %49 = vector.shape_cast %48 : vector<16xf32> to vector<16x1xf32>
    %cst_24 = arith.constant 3.200000e+01 : f32
    %50 = vector.broadcast %cst_24 : f32 to vector<16x1xf32>
    %51 = arith.divf %49, %50 : vector<16x1xf32>
    %52 = vector.broadcast %51 : vector<16x1xf32> to vector<16x32xf32>
    %53 = arith.subf %45, %52 : vector<16x32xf32>
    %54 = arith.mulf %53, %53 : vector<16x32xf32>
    %cst_25 = arith.constant dense<0.000000e+00> : vector<16xf32>
    %55 = vector.multi_reduction <add>, %54, %cst_25 [1] : vector<16x32xf32> to vector<16xf32>
    %56 = vector.shape_cast %55 : vector<16xf32> to vector<16x1xf32>
    %cst_26 = arith.constant 3.200000e+01 : f32
    %57 = vector.broadcast %cst_26 : f32 to vector<16x1xf32>
    %58 = arith.divf %56, %57 : vector<16x1xf32>
    %cst_27 = arith.constant 9.99999974E-6 : f32
    %59 = vector.broadcast %cst_27 : f32 to vector<16x1xf32>
    %60 = arith.addf %58, %59 : vector<16x1xf32>
    %61 = math.rsqrt %60 : vector<16x1xf32>
    %62 = vector.broadcast %61 : vector<16x1xf32> to vector<16x32xf32>
    %63 = arith.mulf %53, %62 : vector<16x32xf32>
    %64 = vector.broadcast %46 : vector<1x32xf32> to vector<16x32xf32>
    %65 = arith.mulf %63, %64 : vector<16x32xf32>
    %66 = vector.broadcast %47 : vector<1x32xf32> to vector<16x32xf32>
    %67 = arith.addf %65, %66 : vector<16x32xf32>
    %c0_28 = arith.constant 0 : index
    %c0_29 = arith.constant 0 : index
    %68 = vector.load %arg7[%c0_28, %c0_29] : memref<32x128xf32, #tpu.memory_space<vmem>>, vector<32x128xf32>
    %cst_30 = arith.constant dense<0.000000e+00> : vector<16x128xf32>
    %69 = tpu.matmul %67, %68, %cst_30 {dimension_numbers = #tpu.dot_dimension_numbers<[1], [0], [0], [1], [0, 0, 1, 1], [], []>} : vector<16x32xf32>, vector<32x128xf32>, vector<16x128xf32> -> vector<16x128xf32>
    %c0_31 = arith.constant 0 : index
    %c0_32 = arith.constant 0 : index
    %70 = vector.load %arg8[%c0_31, %c0_32] : memref<1x128xf32, #tpu.memory_space<vmem>>, vector<1x128xf32>
    %71 = vector.broadcast %70 : vector<1x128xf32> to vector<16x128xf32>
    %72 = arith.addf %69, %71 : vector<16x128xf32>
    %cst_33 = arith.constant 0.000000e+00 : f32
    %73 = vector.broadcast %cst_33 : f32 to vector<16x128xf32>
    %74 = arith.maximumf %72, %73 : vector<16x128xf32>
    %c0_34 = arith.constant 0 : index
    %c0_35 = arith.constant 0 : index
    %75 = vector.load %arg9[%c0_34, %c0_35] : memref<128x32xf32, #tpu.memory_space<vmem>>, vector<128x32xf32>
    %cst_36 = arith.constant dense<0.000000e+00> : vector<16x32xf32>
    %76 = tpu.matmul %74, %75, %cst_36 {dimension_numbers = #tpu.dot_dimension_numbers<[1], [0], [0], [1], [0, 0, 1, 1], [], []>} : vector<16x128xf32>, vector<128x32xf32>, vector<16x32xf32> -> vector<16x32xf32>
    %c0_37 = arith.constant 0 : index
    %c0_38 = arith.constant 0 : index
    %77 = vector.load %arg10[%c0_37, %c0_38] : memref<1x32xf32, #tpu.memory_space<vmem>>, vector<1x32xf32>
    %78 = vector.broadcast %77 : vector<1x32xf32> to vector<16x32xf32>
    %79 = arith.addf %76, %78 : vector<16x32xf32>
    %80 = arith.addf %67, %79 : vector<16x32xf32>
    %c0_39 = arith.constant 0 : index
    %c0_40 = arith.constant 0 : index
    %81 = vector.load %arg11[%c0_39, %c0_40] : memref<1x32xf32, #tpu.memory_space<vmem>>, vector<1x32xf32>
    %c0_41 = arith.constant 0 : index
    %c0_42 = arith.constant 0 : index
    %82 = vector.load %arg12[%c0_41, %c0_42] : memref<1x32xf32, #tpu.memory_space<vmem>>, vector<1x32xf32>
    %cst_43 = arith.constant dense<0.000000e+00> : vector<16xf32>
    %83 = vector.multi_reduction <add>, %80, %cst_43 [1] : vector<16x32xf32> to vector<16xf32>
    %84 = vector.shape_cast %83 : vector<16xf32> to vector<16x1xf32>
    %cst_44 = arith.constant 3.200000e+01 : f32
    %85 = vector.broadcast %cst_44 : f32 to vector<16x1xf32>
    %86 = arith.divf %84, %85 : vector<16x1xf32>
    %87 = vector.broadcast %86 : vector<16x1xf32> to vector<16x32xf32>
    %88 = arith.subf %80, %87 : vector<16x32xf32>
    %89 = arith.mulf %88, %88 : vector<16x32xf32>
    %cst_45 = arith.constant dense<0.000000e+00> : vector<16xf32>
    %90 = vector.multi_reduction <add>, %89, %cst_45 [1] : vector<16x32xf32> to vector<16xf32>
    %91 = vector.shape_cast %90 : vector<16xf32> to vector<16x1xf32>
    %cst_46 = arith.constant 3.200000e+01 : f32
    %92 = vector.broadcast %cst_46 : f32 to vector<16x1xf32>
    %93 = arith.divf %91, %92 : vector<16x1xf32>
    %cst_47 = arith.constant 9.99999974E-6 : f32
    %94 = vector.broadcast %cst_47 : f32 to vector<16x1xf32>
    %95 = arith.addf %93, %94 : vector<16x1xf32>
    %96 = math.rsqrt %95 : vector<16x1xf32>
    %97 = vector.broadcast %96 : vector<16x1xf32> to vector<16x32xf32>
    %98 = arith.mulf %88, %97 : vector<16x32xf32>
    %99 = vector.broadcast %81 : vector<1x32xf32> to vector<16x32xf32>
    %100 = arith.mulf %98, %99 : vector<16x32xf32>
    %101 = vector.broadcast %82 : vector<1x32xf32> to vector<16x32xf32>
    %102 = arith.addf %100, %101 : vector<16x32xf32>
    %103 = vector.shape_cast %102 : vector<16x32xf32> to vector<2x8x32xf32>
    %c0_48 = arith.constant 0 : index
    %c0_49 = arith.constant 0 : index
    %c0_50 = arith.constant 0 : index
    %104 = vector.load %arg13[%c0_48, %c0_49, %c0_50] : memref<2x8x32xf32, #tpu.memory_space<vmem>>, vector<2x8x32xf32>
    tpu.vector_store %arg13[%c0_48, %c0_49, %c0_50], %103 {strides = array<i32>} : memref<2x8x32xf32, #tpu.memory_space<vmem>>, vector<2x8x32xf32>,
    return
  }
}

</mosaic_0001>

<llo_original>
// kernel: tpu_custom_call.1
$region0: #{tpu_custom_call.1}
  #allocation0 [shape = 'u32[]', space=smem, size = 0x4, offset = 0x4, fixed_abs, tag = 'smem constant byte address 0x4 - core index']
  #allocation1 [shape = 'u32[72,128]{1,0:T(1,128)}', space=vmem, size = 0x9000, scoped, tag = 'internal scratch']
  %s0 = inlined_call_operand.vmem [shape: f32[2,8,32], index: 0, kind: input, shape index: {}]
  %s1 = inlined_call_operand.vmem [shape: f32[4,32,24], index: 1, kind: input, shape index: {}]
  %s2 = inlined_call_operand.vmem [shape: f32[4,1,24], index: 2, kind: input, shape index: {}]
  %s3 = inlined_call_operand.vmem [shape: f32[4,8,32], index: 3, kind: input, shape index: {}]
  %s4 = inlined_call_operand.vmem [shape: f32[1,32], index: 4, kind: input, shape index: {}]
  %s5 = inlined_call_operand.vmem [shape: f32[1,32], index: 5, kind: input, shape index: {}]
  %s6 = inlined_call_operand.vmem [shape: f32[1,32], index: 6, kind: input, shape index: {}]
  %s7 = inlined_call_operand.vmem [shape: f32[32,128], index: 7, kind: input, shape index: {}]
  %s8 = inlined_call_operand.vmem [shape: f32[1,128], index: 8, kind: input, shape index: {}]
  %s9 = inlined_call_operand.vmem [shape: f32[128,32], index: 9, kind: input, shape index: {}]
  %s10 = inlined_call_operand.vmem [shape: f32[1,32], index: 10, kind: input, shape index: {}]
  %s11 = inlined_call_operand.vmem [shape: f32[1,32], index: 11, kind: input, shape index: {}]
  %s12 = inlined_call_operand.vmem [shape: f32[1,32], index: 12, kind: input, shape index: {}]
  %s13 = inlined_call_operand.hbm [shape: f32[2,8,32], index: 13, kind: output, shape index: {}]
  %s14 = sld [smem:[#allocation0]]
  $region62: #{tpu_custom_call.1} parent=0
    _
  %s16 = ssub.s32 1, %s14
  %s17 = scalar_select 0, %s16, %s14
  $region1: #{tpu_custom_call.1} parent=0
    #allocation2 [shape = 'u8[8192]{0}', space=vmem, size = 0x2000, scoped, tag = 'output window, operand 0, single buffered']
    #allocation3 [shape = 's32[1]{0}', space=sflag, size = 0x4, scoped, tag = 'scoped memory for tpu_custom_call.1']
    %18 = vsyncpa [#allocation3], 0
    // Predicated region
    $region2: #{tpu_custom_call.1} parent=1 // pred_check
      _
    $region3: #{tpu_custom_call.1} parent=1 // pred_check_branch
      %20 = sbr.rel (0) target = $region5
    $region4: #{tpu_custom_call.1} parent=1 // pred_region
      _
    $region5: #{tpu_custom_call.1} parent=1 // pred_fallthru
      _
    // Predicated region
    $region6: #{tpu_custom_call.1} parent=1 // pred_check
      _
    $region7: #{tpu_custom_call.1} parent=1 // pred_check_branch
      %22 = sbr.rel (0) target = $region9
    $region8: #{tpu_custom_call.1} parent=1 // pred_region
      _
    $region9: #{tpu_custom_call.1} parent=1 // pred_fallthru
      _
    // Predicated region
    $region10: #{tpu_custom_call.1} parent=1 // pred_check
      _
    $region11: #{tpu_custom_call.1} parent=1 // pred_check_branch
      %24 = sbr.rel (0) target = $region13
    $region12: #{tpu_custom_call.1} parent=1 // pred_region
      _
    $region13: #{tpu_custom_call.1} parent=1 // pred_fallthru
      _
    // Predicated region
    $region14: #{tpu_custom_call.1} parent=1 // pred_check
      _
    $region15: #{tpu_custom_call.1} parent=1 // pred_check_branch
      %26 = sbr.rel (0) target = $region17
    $region16: #{tpu_custom_call.1} parent=1 // pred_region
      _
    $region17: #{tpu_custom_call.1} parent=1 // pred_fallthru
      _
    // Predicated region
    $region18: #{tpu_custom_call.1} parent=1 // pred_check
      _
    $region19: #{tpu_custom_call.1} parent=1 // pred_check_branch
      %28 = sbr.rel (0) target = $region21
    $region20: #{tpu_custom_call.1} parent=1 // pred_region
      _
    $region21: #{tpu_custom_call.1} parent=1 // pred_fallthru
      _
    // Predicated region
    $region22: #{tpu_custom_call.1} parent=1 // pred_check
      _
    $region23: #{tpu_custom_call.1} parent=1 // pred_check_branch
      %30 = sbr.rel (0) target = $region25
    $region24: #{tpu_custom_call.1} parent=1 // pred_region
      _
    $region25: #{tpu_custom_call.1} parent=1 // pred_fallthru
      _
    // Predicated region
    $region26: #{tpu_custom_call.1} parent=1 // pred_check
      _
    $region27: #{tpu_custom_call.1} parent=1 // pred_check_branch
      %32 = sbr.rel (0) target = $region29
    $region28: #{tpu_custom_call.1} parent=1 // pred_region
      _
    $region29: #{tpu_custom_call.1} parent=1 // pred_fallthru
      _
    // Predicated region
    $region30: #{tpu_custom_call.1} parent=1 // pred_check
      _
    $region31: #{tpu_custom_call.1} parent=1 // pred_check_branch
      %34 = sbr.rel (0) target = $region33
    $region32: #{tpu_custom_call.1} parent=1 // pred_region
      _
    $region33: #{tpu_custom_call.1} parent=1 // pred_fallthru
      _
    // Predicated region
    $region34: #{tpu_custom_call.1} parent=1 // pred_check
      _
    $region35: #{tpu_custom_call.1} parent=1 // pred_check_branch
      %36 = sbr.rel (0) target = $region37
    $region36: #{tpu_custom_call.1} parent=1 // pred_region
      _
    $region37: #{tpu_custom_call.1} parent=1 // pred_fallthru
      _
    // Predicated region
    $region38: #{tpu_custom_call.1} parent=1 // pred_check
      _
    $region39: #{tpu_custom_call.1} parent=1 // pred_check_branch
      %38 = sbr.rel (0) target = $region41
    $region40: #{tpu_custom_call.1} parent=1 // pred_region
      _
    $region41: #{tpu_custom_call.1} parent=1 // pred_fallthru
      _
    // Predicated region
    $region42: #{tpu_custom_call.1} parent=1 // pred_check
      _
    $region43: #{tpu_custom_call.1} parent=1 // pred_check_branch
      %40 = sbr.rel (0) target = $region45
    $region44: #{tpu_custom_call.1} parent=1 // pred_region
      _
    $region45: #{tpu_custom_call.1} parent=1 // pred_fallthru
      _
    // Predicated region
    $region46: #{tpu_custom_call.1} parent=1 // pred_check
      _
    $region47: #{tpu_custom_call.1} parent=1 // pred_check_branch
      %42 = sbr.rel (0) target = $region49
    $region48: #{tpu_custom_call.1} parent=1 // pred_region
      _
    $region49: #{tpu_custom_call.1} parent=1 // pred_fallthru
      _
    // Predicated region
    $region50: #{tpu_custom_call.1} parent=1 // pred_check
      _
    $region51: #{tpu_custom_call.1} parent=1 // pred_check_branch
      %44 = sbr.rel (0) target = $region53
    $region52: #{tpu_custom_call.1} parent=1 // pred_region
      _
    $region53: #{tpu_custom_call.1} parent=1 // pred_fallthru
      _
    %v45 = vld [vmem:[%s0] sm:$0xff]
    %v46 = vld [vmem:[%s0 + $0x8] sm:$0xff]
    %v47 = vld [vmem:[%s1] sm:$0xff]
    %v48 = vld [vmem:[%s1 + $0x8] sm:$0xff]
    %v49 = vld [vmem:[%s1 + $0x10] sm:$0xff]
    %v50 = vld [vmem:[%s1 + $0x18] sm:$0xff]
    %v51 = vld [vmem:[%s1 + $0x20] sm:$0xff]
    %v52 = vld [vmem:[%s1 + $0x28] sm:$0xff]
    %v53 = vld [vmem:[%s1 + $0x30] sm:$0xff]
    %v54 = vld [vmem:[%s1 + $0x38] sm:$0xff]
    %v55 = vld [vmem:[%s1 + $0x40] sm:$0xff]
    %v56 = vld [vmem:[%s1 + $0x48] sm:$0xff]
    %v57 = vld [vmem:[%s1 + $0x50] sm:$0xff]
    %v58 = vld [vmem:[%s1 + $0x58] sm:$0xff]
    %v59 = vld [vmem:[%s1 + $0x60] sm:$0xff]
    %v60 = vld [vmem:[%s1 + $0x68] sm:$0xff]
    %v61 = vld [vmem:[%s1 + $0x70] sm:$0xff]
    %v62 = vld [vmem:[%s1 + $0x78] sm:$0xff]
    %v63 = vld [vmem:[%s2] sm:$0x1]
    %v64 = vld [vmem:[%s2 + $0x1] sm:$0x1]
    %v65 = vld [vmem:[%s2 + $0x2] sm:$0x1]
    %v66 = vld [vmem:[%s2 + $0x3] sm:$0x1]
    %v71 = vperm.slane %v63, 0
    %v72 = vperm.slane %v64, 0
    %v73 = vperm.slane %v65, 0
    %v74 = vperm.slane %v66, 0
    %vm79 = vcmask 261120
    %v81 = vsel %vm79, %v45, 0
    %83 = vmatpush.msra.mxu0 0.0
    %84 = vmatpush.msra.mxu0 0.0
    %85 = vmatpush.msra.mxu0 0.0
    %86 = vmatpush.msra.mxu0 0.0
    %87 = vmatpush.msra.mxu0 0.0
    %88 = vmatpush.msra.mxu0 0.0
    %89 = vmatpush.msra.mxu0 0.0
    %90 = vmatpush.msra.mxu0 0.0
    %91 = vmatpush.msra.mxu0 0.0
    %92 = vmatpush.msra.mxu0 0.0
    %93 = vmatpush.msra.mxu0 0.0
    %94 = vmatpush.msra.mxu0 0.0
    %95 = vmatpush.msra.mxu0 %v50
    %96 = vmatpush.msra.mxu0 %v49
    %97 = vmatpush.msra.mxu0 %v48
    %98 = vmatpush.msra.mxu0 %v47
    %99 = vmatmul.f32.gmra.mxu0 %v81
    %v100 = vpop.f32.mrf.mxu0
    %v101 = vadd.f32 %v71, %v100
    %102 = vdwg.mxu0
    %103 = vmatpush.msra.mxu0 0.0
    %104 = vmatpush.msra.mxu0 0.0
    %105 = vmatpush.msra.mxu0 0.0
    %106 = vmatpush.msra.mxu0 0.0
    %107 = vmatpush.msra.mxu0 0.0
    %108 = vmatpush.msra.mxu0 0.0
    %109 = vmatpush.msra.mxu0 0.0
    %110 = vmatpush.msra.mxu0 0.0
    %111 = vmatpush.msra.mxu0 0.0
    %112 = vmatpush.msra.mxu0 0.0
    %113 = vmatpush.msra.mxu0 0.0
    %114 = vmatpush.msra.mxu0 0.0
    %115 = vmatpush.msra.mxu0 %v54
    %116 = vmatpush.msra.mxu0 %v53
    %117 = vmatpush.msra.mxu0 %v52
    %118 = vmatpush.msra.mxu0 %v51
    %119 = vmatmul.f32.gmra.mxu0 %v81
    %v120 = vpop.f32.mrf.mxu0
    %v121 = vadd.f32 %v72, %v120
    %122 = vdwg.mxu0
    %123 = vmatpush.msra.mxu0 0.0
    %124 = vmatpush.msra.mxu0 0.0
    %125 = vmatpush.msra.mxu0 0.0
    %126 = vmatpush.msra.mxu0 0.0
    %127 = vmatpush.msra.mxu0 0.0
    %128 = vmatpush.msra.mxu0 0.0
    %129 = vmatpush.msra.mxu0 0.0
    %130 = vmatpush.msra.mxu0 0.0
    %131 = vmatpush.msra.mxu0 0.0
    %132 = vmatpush.msra.mxu0 0.0
    %133 = vmatpush.msra.mxu0 0.0
    %134 = vmatpush.msra.mxu0 0.0
    %135 = vmatpush.msra.mxu0 %v58
    %136 = vmatpush.msra.mxu0 %v57
    %137 = vmatpush.msra.mxu0 %v56
    %138 = vmatpush.msra.mxu0 %v55
    %139 = vmatmul.f32.gmra.mxu0 %v81
    %v140 = vpop.f32.mrf.mxu0
    %v141 = vadd.f32 %v73, %v140
    %142 = vdwg.mxu0
    %143 = vmatpush.msra.mxu0 0.0
    %144 = vmatpush.msra.mxu0 0.0
    %145 = vmatpush.msra.mxu0 0.0
    %146 = vmatpush.msra.mxu0 0.0
    %147 = vmatpush.msra.mxu0 0.0
    %148 = vmatpush.msra.mxu0 0.0
    %149 = vmatpush.msra.mxu0 0.0
    %150 = vmatpush.msra.mxu0 0.0
    %151 = vmatpush.msra.mxu0 0.0
    %152 = vmatpush.msra.mxu0 0.0
    %153 = vmatpush.msra.mxu0 0.0
    %154 = vmatpush.msra.mxu0 0.0
    %155 = vmatpush.msra.mxu0 %v62
    %156 = vmatpush.msra.mxu0 %v61
    %157 = vmatpush.msra.mxu0 %v60
    %158 = vmatpush.msra.mxu0 %v59
    %159 = vmatmul.f32.gmra.mxu0 %v81
    %v160 = vpop.f32.mrf.mxu0
    %v161 = vadd.f32 %v74, %v160
    %162 = vdwg.mxu0
    %v164 = vsel %vm79, %v46, 0
    %166 = vmatpush.msra.mxu0 0.0
    %167 = vmatpush.msra.mxu0 0.0
    %168 = vmatpush.msra.mxu0 0.0
    %169 = vmatpush.msra.mxu0 0.0
    %170 = vmatpush.msra.mxu0 0.0
    %171 = vmatpush.msra.mxu0 0.0
    %172 = vmatpush.msra.mxu0 0.0
    %173 = vmatpush.msra.mxu0 0.0
    %174 = vmatpush.msra.mxu0 0.0
    %175 = vmatpush.msra.mxu0 0.0
    %176 = vmatpush.msra.mxu0 0.0
    %177 = vmatpush.msra.mxu0 0.0
    %178 = vmatpush.msra.mxu0 %v50
    %179 = vmatpush.msra.mxu0 %v49
    %180 = vmatpush.msra.mxu0 %v48
    %181 = vmatpush.msra.mxu0 %v47
    %182 = vmatmul.f32.gmra.mxu0 %v164
    %v183 = vpop.f32.mrf.mxu0
    %v184 = vadd.f32 %v71, %v183
    %185 = vdwg.mxu0
    %186 = vmatpush.msra.mxu0 0.0
    %187 = vmatpush.msra.mxu0 0.0
    %188 = vmatpush.msra.mxu0 0.0
    %189 = vmatpush.msra.mxu0 0.0
    %190 = vmatpush.msra.mxu0 0.0
    %191 = vmatpush.msra.mxu0 0.0
    %192 = vmatpush.msra.mxu0 0.0
    %193 = vmatpush.msra.mxu0 0.0
    %194 = vmatpush.msra.mxu0 0.0
    %195 = vmatpush.msra.mxu0 0.0
    %196 = vmatpush.msra.mxu0 0.0
    %197 = vmatpush.msra.mxu0 0.0
    %198 = vmatpush.msra.mxu0 %v54
    %199 = vmatpush.msra.mxu0 %v53
    %200 = vmatpush.msra.mxu0 %v52
    %201 = vmatpush.msra.mxu0 %v51
    %202 = vmatmul.f32.gmra.mxu0 %v164
    %v203 = vpop.f32.mrf.mxu0
    %v204 = vadd.f32 %v72, %v203
    %205 = vdwg.mxu0
    %206 = vmatpush.msra.mxu0 0.0
    %207 = vmatpush.msra.mxu0 0.0
    %208 = vmatpush.msra.mxu0 0.0
    %209 = vmatpush.msra.mxu0 0.0
    %210 = vmatpush.msra.mxu0 0.0
    %211 = vmatpush.msra.mxu0 0.0
    %212 = vmatpush.msra.mxu0 0.0
    %213 = vmatpush.msra.mxu0 0.0
    %214 = vmatpush.msra.mxu0 0.0
    %215 = vmatpush.msra.mxu0 0.0
    %216 = vmatpush.msra.mxu0 0.0
    %217 = vmatpush.msra.mxu0 0.0
    %218 = vmatpush.msra.mxu0 %v58
    %219 = vmatpush.msra.mxu0 %v57
    %220 = vmatpush.msra.mxu0 %v56
    %221 = vmatpush.msra.mxu0 %v55
    %222 = vmatmul.f32.gmra.mxu0 %v164
    %v223 = vpop.f32.mrf.mxu0
    %v224 = vadd.f32 %v73, %v223
    %225 = vdwg.mxu0
    %226 = vmatpush.msra.mxu0 0.0
    %227 = vmatpush.msra.mxu0 0.0
    %228 = vmatpush.msra.mxu0 0.0
    %229 = vmatpush.msra.mxu0 0.0
    %230 = vmatpush.msra.mxu0 0.0
    %231 = vmatpush.msra.mxu0 0.0
    %232 = vmatpush.msra.mxu0 0.0
    %233 = vmatpush.msra.mxu0 0.0
    %234 = vmatpush.msra.mxu0 0.0
    %235 = vmatpush.msra.mxu0 0.0
    %236 = vmatpush.msra.mxu0 0.0
    %237 = vmatpush.msra.mxu0 0.0
    %238 = vmatpush.msra.mxu0 %v62
    %239 = vmatpush.msra.mxu0 %v61
    %240 = vmatpush.msra.mxu0 %v60
    %241 = vmatpush.msra.mxu0 %v59
    %242 = vmatmul.f32.gmra.mxu0 %v164
    %v243 = vpop.f32.mrf.mxu0
    %v244 = vadd.f32 %v74, %v243
    %245 = vdwg.mxu0
    %247 = vrot.lane.b32.xlu0 %v101, 120
    %v248 = vpop.permute.xlu0 %247
    %vm249 = vcmask 64512
    %v250 = vsel %vm249, %v101, 0
    %v252 = vsel %vm249, %v248, 0
    %254 = vmatpush.xpose.msra.mxu0 0.0
    %255 = vmatpush.xpose.msra.mxu0 0.0
    %256 = vmatpush.xpose.msra.mxu0 0.0
    %257 = vmatpush.xpose.msra.mxu0 0.0
    %258 = vmatpush.xpose.msra.mxu0 0.0
    %259 = vmatpush.xpose.msra.mxu0 0.0
    %260 = vmatpush.xpose.msra.mxu0 0.0
    %261 = vmatpush.xpose.msra.mxu0 0.0
    %262 = vmatpush.xpose.msra.mxu0 0.0
    %263 = vmatpush.xpose.msra.mxu0 0.0
    %264 = vmatpush.xpose.msra.mxu0 0.0
    %265 = vmatpush.xpose.msra.mxu0 0.0
    %266 = vmatpush.xpose.msra.mxu0 0.0
    %267 = vmatpush.xpose.msra.mxu0 0.0
    %268 = vmatpush.xpose.msra.mxu0 0.0
    %269 = vmatpush.xpose.msra.mxu0 %v252
    %270 = vmatmul.f32.gmra.mxu0 %v250
    %v271 = vpop.f32.mrf.mxu0
    %v272 = vadd.f32 0.0, %v271
    %273 = vdwg.mxu0
    %275 = vrot.lane.b32.xlu0 %v121, 120
    %v276 = vpop.permute.xlu0 %275
    %v277 = vsel %vm249, %v121, 0
    %v279 = vsel %vm249, %v276, 0
    %281 = vmatpush.xpose.msra.mxu0 0.0
    %282 = vmatpush.xpose.msra.mxu0 0.0
    %283 = vmatpush.xpose.msra.mxu0 0.0
    %284 = vmatpush.xpose.msra.mxu0 0.0
    %285 = vmatpush.xpose.msra.mxu0 0.0
    %286 = vmatpush.xpose.msra.mxu0 0.0
    %287 = vmatpush.xpose.msra.mxu0 0.0
    %288 = vmatpush.xpose.msra.mxu0 0.0
    %289 = vmatpush.xpose.msra.mxu0 0.0
    %290 = vmatpush.xpose.msra.mxu0 0.0
    %291 = vmatpush.xpose.msra.mxu0 0.0
    %292 = vmatpush.xpose.msra.mxu0 0.0
    %293 = vmatpush.xpose.msra.mxu0 0.0
    %294 = vmatpush.xpose.msra.mxu0 0.0
    %295 = vmatpush.xpose.msra.mxu0 0.0
    %296 = vmatpush.xpose.msra.mxu0 %v279
    %297 = vmatmul.f32.gmra.mxu0 %v277
    %v298 = vpop.f32.mrf.mxu0
    %v299 = vadd.f32 0.0, %v298
    %300 = vdwg.mxu0
    %302 = vrot.lane.b32.xlu0 %v141, 120
    %v303 = vpop.permute.xlu0 %302
    %v304 = vsel %vm249, %v141, 0
    %v306 = vsel %vm249, %v303, 0
    %308 = vmatpush.xpose.msra.mxu0 0.0
    %309 = vmatpush.xpose.msra.mxu0 0.0
    %310 = vmatpush.xpose.msra.mxu0 0.0
    %311 = vmatpush.xpose.msra.mxu0 0.0
    %312 = vmatpush.xpose.msra.mxu0 0.0
    %313 = vmatpush.xpose.msra.mxu0 0.0
    %314 = vmatpush.xpose.msra.mxu0 0.0
    %315 = vmatpush.xpose.msra.mxu0 0.0
    %316 = vmatpush.xpose.msra.mxu0 0.0
    %317 = vmatpush.xpose.msra.mxu0 0.0
    %318 = vmatpush.xpose.msra.mxu0 0.0
    %319 = vmatpush.xpose.msra.mxu0 0.0
    %320 = vmatpush.xpose.msra.mxu0 0.0
    %321 = vmatpush.xpose.msra.mxu0 0.0
    %322 = vmatpush.xpose.msra.mxu0 0.0
    %323 = vmatpush.xpose.msra.mxu0 %v306
    %324 = vmatmul.f32.gmra.mxu0 %v304
    %v325 = vpop.f32.mrf.mxu0
    %v326 = vadd.f32 0.0, %v325
    %327 = vdwg.mxu0
    %329 = vrot.lane.b32.xlu0 %v161, 120
    %v330 = vpop.permute.xlu0 %329
    %v331 = vsel %vm249, %v161, 0
    %v333 = vsel %vm249, %v330, 0
    %335 = vmatpush.xpose.msra.mxu0 0.0
    %336 = vmatpush.xpose.msra.mxu0 0.0
    %337 = vmatpush.xpose.msra.mxu0 0.0
    %338 = vmatpush.xpose.msra.mxu0 0.0
    %339 = vmatpush.xpose.msra.mxu0 0.0
    %340 = vmatpush.xpose.msra.mxu0 0.0
    %341 = vmatpush.xpose.msra.mxu0 0.0
    %342 = vmatpush.xpose.msra.mxu0 0.0
    %343 = vmatpush.xpose.msra.mxu0 0.0
    %344 = vmatpush.xpose.msra.mxu0 0.0
    %345 = vmatpush.xpose.msra.mxu0 0.0
    %346 = vmatpush.xpose.msra.mxu0 0.0
    %347 = vmatpush.xpose.msra.mxu0 0.0
    %348 = vmatpush.xpose.msra.mxu0 0.0
    %349 = vmatpush.xpose.msra.mxu0 0.0
    %350 = vmatpush.xpose.msra.mxu0 %v333
    %351 = vmatmul.f32.gmra.mxu0 %v331
    %v352 = vpop.f32.mrf.mxu0
    %v353 = vadd.f32 0.0, %v352
    %354 = vdwg.mxu0
    %356 = vrot.lane.b32.xlu0 %v184, 120
    %v357 = vpop.permute.xlu0 %356
    %v358 = vsel %vm249, %v184, 0
    %v360 = vsel %vm249, %v357, 0
    %362 = vmatpush.xpose.msra.mxu0 0.0
    %363 = vmatpush.xpose.msra.mxu0 0.0
    %364 = vmatpush.xpose.msra.mxu0 0.0
    %365 = vmatpush.xpose.msra.mxu0 0.0
    %366 = vmatpush.xpose.msra.mxu0 0.0
    %367 = vmatpush.xpose.msra.mxu0 0.0
    %368 = vmatpush.xpose.msra.mxu0 0.0
    %369 = vmatpush.xpose.msra.mxu0 0.0
    %370 = vmatpush.xpose.msra.mxu0 0.0
    %371 = vmatpush.xpose.msra.mxu0 0.0
    %372 = vmatpush.xpose.msra.mxu0 0.0
    %373 = vmatpush.xpose.msra.mxu0 0.0
    %374 = vmatpush.xpose.msra.mxu0 0.0
    %375 = vmatpush.xpose.msra.mxu0 0.0
    %376 = vmatpush.xpose.msra.mxu0 0.0
    %377 = vmatpush.xpose.msra.mxu0 %v360
    %378 = vmatmul.f32.gmra.mxu0 %v358
    %v379 = vpop.f32.mrf.mxu0
    %v380 = vadd.f32 0.0, %v379
    %381 = vdwg.mxu0
    %383 = vrot.lane.b32.xlu0 %v204, 120
    %v384 = vpop.permute.xlu0 %383
    %v385 = vsel %vm249, %v204, 0
    %v387 = vsel %vm249, %v384, 0
    %389 = vmatpush.xpose.msra.mxu0 0.0
    %390 = vmatpush.xpose.msra.mxu0 0.0
    %391 = vmatpush.xpose.msra.mxu0 0.0
    %392 = vmatpush.xpose.msra.mxu0 0.0
    %393 = vmatpush.xpose.msra.mxu0 0.0
    %394 = vmatpush.xpose.msra.mxu0 0.0
    %395 = vmatpush.xpose.msra.mxu0 0.0
    %396 = vmatpush.xpose.msra.mxu0 0.0
    %397 = vmatpush.xpose.msra.mxu0 0.0
    %398 = vmatpush.xpose.msra.mxu0 0.0
    %399 = vmatpush.xpose.msra.mxu0 0.0
    %400 = vmatpush.xpose.msra.mxu0 0.0
    %401 = vmatpush.xpose.msra.mxu0 0.0
    %402 = vmatpush.xpose.msra.mxu0 0.0
    %403 = vmatpush.xpose.msra.mxu0 0.0
    %404 = vmatpush.xpose.msra.mxu0 %v387
    %405 = vmatmul.f32.gmra.mxu0 %v385
    %v406 = vpop.f32.mrf.mxu0
    %v407 = vadd.f32 0.0, %v406
    %408 = vdwg.mxu0
    %410 = vrot.lane.b32.xlu0 %v224, 120
    %v411 = vpop.permute.xlu0 %410
    %v412 = vsel %vm249, %v224, 0
    %v414 = vsel %vm249, %v411, 0
    %416 = vmatpush.xpose.msra.mxu0 0.0
    %417 = vmatpush.xpose.msra.mxu0 0.0
    %418 = vmatpush.xpose.msra.mxu0 0.0
    %419 = vmatpush.xpose.msra.mxu0 0.0
    %420 = vmatpush.xpose.msra.mxu0 0.0
    %421 = vmatpush.xpose.msra.mxu0 0.0
    %422 = vmatpush.xpose.msra.mxu0 0.0
    %423 = vmatpush.xpose.msra.mxu0 0.0
    %424 = vmatpush.xpose.msra.mxu0 0.0
    %425 = vmatpush.xpose.msra.mxu0 0.0
    %426 = vmatpush.xpose.msra.mxu0 0.0
    %427 = vmatpush.xpose.msra.mxu0 0.0
    %428 = vmatpush.xpose.msra.mxu0 0.0
    %429 = vmatpush.xpose.msra.mxu0 0.0
    %430 = vmatpush.xpose.msra.mxu0 0.0
    %431 = vmatpush.xpose.msra.mxu0 %v414
    %432 = vmatmul.f32.gmra.mxu0 %v412
    %v433 = vpop.f32.mrf.mxu0
    %v434 = vadd.f32 0.0, %v433
    %435 = vdwg.mxu0
    %437 = vrot.lane.b32.xlu0 %v244, 120
    %v438 = vpop.permute.xlu0 %437
    %v439 = vsel %vm249, %v244, 0
    %v441 = vsel %vm249, %v438, 0
    %443 = vmatpush.xpose.msra.mxu0 0.0
    %444 = vmatpush.xpose.msra.mxu0 0.0
    %445 = vmatpush.xpose.msra.mxu0 0.0
    %446 = vmatpush.xpose.msra.mxu0 0.0
    %447 = vmatpush.xpose.msra.mxu0 0.0
    %448 = vmatpush.xpose.msra.mxu0 0.0
    %449 = vmatpush.xpose.msra.mxu0 0.0
    %450 = vmatpush.xpose.msra.mxu0 0.0
    %451 = vmatpush.xpose.msra.mxu0 0.0
    %452 = vmatpush.xpose.msra.mxu0 0.0
    %453 = vmatpush.xpose.msra.mxu0 0.0
    %454 = vmatpush.xpose.msra.mxu0 0.0
    %455 = vmatpush.xpose.msra.mxu0 0.0
    %456 = vmatpush.xpose.msra.mxu0 0.0
    %457 = vmatpush.xpose.msra.mxu0 0.0
    %458 = vmatpush.xpose.msra.mxu0 %v441
    %459 = vmatmul.f32.gmra.mxu0 %v439
    %v460 = vpop.f32.mrf.mxu0
    %v461 = vadd.f32 0.0, %v460
    %462 = vdwg.mxu0
    %v463 = vsel %vm249, %v272, -inf
    %464 = vmax.xlane.f32.xlu0 %v463
    %v465 = vpop.xlane.xlu0 %464
    %v466 = vsel %vm249, %v299, -inf
    %467 = vmax.xlane.f32.xlu0 %v466
    %v468 = vpop.xlane.xlu0 %467
    %v469 = vsel %vm249, %v326, -inf
    %470 = vmax.xlane.f32.xlu0 %v469
    %v471 = vpop.xlane.xlu0 %470
    %v472 = vsel %vm249, %v353, -inf
    %473 = vmax.xlane.f32.xlu0 %v472
    %v474 = vpop.xlane.xlu0 %473
    %v475 = vsel %vm249, %v380, -inf
    %476 = vmax.xlane.f32.xlu0 %v475
    %v477 = vpop.xlane.xlu0 %476
    %v478 = vsel %vm249, %v407, -inf
    %479 = vmax.xlane.f32.xlu0 %v478
    %v480 = vpop.xlane.xlu0 %479
    %v481 = vsel %vm249, %v434, -inf
    %482 = vmax.xlane.f32.xlu0 %v481
    %v483 = vpop.xlane.xlu0 %482
    %v484 = vsel %vm249, %v461, -inf
    %485 = vmax.xlane.f32.xlu0 %v484
    %v486 = vpop.xlane.xlu0 %485
    %v487 = vsub.f32 %v272, %v465
    %v488 = vsub.f32 %v299, %v468
    %v489 = vsub.f32 %v326, %v471
    %v490 = vsub.f32 %v353, %v474
    %v491 = vsub.f32 %v380, %v477
    %v492 = vsub.f32 %v407, %v480
    %v493 = vsub.f32 %v434, %v483
    %v494 = vsub.f32 %v461, %v486
    %v495 = vmul.f32 %v487, 1.442695
    %v496 = vpow.pop %v495
    %v497 = vmul.f32 %v488, 1.442695
    %v498 = vpow.pop %v497
    %v499 = vmul.f32 %v489, 1.442695
    %v500 = vpow.pop %v499
    %v501 = vmul.f32 %v490, 1.442695
    %v502 = vpow.pop %v501
    %v503 = vmul.f32 %v491, 1.442695
    %v504 = vpow.pop %v503
    %v505 = vmul.f32 %v492, 1.442695
    %v506 = vpow.pop %v505
    %v507 = vmul.f32 %v493, 1.442695
    %v508 = vpow.pop %v507
    %v509 = vmul.f32 %v494, 1.442695
    %v510 = vpow.pop %v509
    %v511 = vsel %vm249, %v496, 0.0
    %512 = vadd.xlane.f32.xlu0 %v511
    %v513 = vpop.xlane.xlu0 %512
    %v514 = vsel %vm249, %v498, 0.0
    %515 = vadd.xlane.f32.xlu0 %v514
    %v516 = vpop.xlane.xlu0 %515
    %v517 = vsel %vm249, %v500, 0.0
    %518 = vadd.xlane.f32.xlu0 %v517
    %v519 = vpop.xlane.xlu0 %518
    %v520 = vsel %vm249, %v502, 0.0
    %521 = vadd.xlane.f32.xlu0 %v520
    %v522 = vpop.xlane.xlu0 %521
    %v523 = vsel %vm249, %v504, 0.0
    %524 = vadd.xlane.f32.xlu0 %v523
    %v525 = vpop.xlane.xlu0 %524
    %v526 = vsel %vm249, %v506, 0.0
    %527 = vadd.xlane.f32.xlu0 %v526
    %v528 = vpop.xlane.xlu0 %527
    %v529 = vsel %vm249, %v508, 0.0
    %530 = vadd.xlane.f32.xlu0 %v529
    %v531 = vpop.xlane.xlu0 %530
    %v532 = vsel %vm249, %v510, 0.0
    %533 = vadd.xlane.f32.xlu0 %v532
    %v534 = vpop.xlane.xlu0 %533
    %v535 = vrcp.pop %v513
    %v536 = vmul.f32 %v513, %v535
    %v537 = vsub.f32 1.0, %v536
    %v538 = vmul.f32 %v535, %v537
    %v539 = vadd.f32 %v535, %v538
    %vm540 = vweird.f32 %v513
    %vm541 = vweird.f32 %v535
    %vm542 = vmor %vm540, %vm541
    %v543 = vsel %vm542, %v535, %v539
    %v544 = vand.u32 2147483647, %v513
    %vm545 = vcmp.eq.f32.partialorder %v544, 8.507059e+37
    %v546 = vand.u32 %v513, 2147483648
    %v547 = vor.u32 1.1754944e-38, %v546
    %v548 = vsel %vm545, %v547, %v543
    %v549 = vmul.f32 %v496, %v548
    %v550 = vrcp.pop %v516
    %v551 = vmul.f32 %v516, %v550
    %v552 = vsub.f32 1.0, %v551
    %v553 = vmul.f32 %v550, %v552
    %v554 = vadd.f32 %v550, %v553
    %vm555 = vweird.f32 %v516
    %vm556 = vweird.f32 %v550
    %vm557 = vmor %vm555, %vm556
    %v558 = vsel %vm557, %v550, %v554
    %v559 = vand.u32 2147483647, %v516
    %vm560 = vcmp.eq.f32.partialorder %v559, 8.507059e+37
    %v561 = vand.u32 %v516, 2147483648
    %v562 = vor.u32 1.1754944e-38, %v561
    %v563 = vsel %vm560, %v562, %v558
    %v564 = vmul.f32 %v498, %v563
    %v565 = vrcp.pop %v519
    %v566 = vmul.f32 %v519, %v565
    %v567 = vsub.f32 1.0, %v566
    %v568 = vmul.f32 %v565, %v567
    %v569 = vadd.f32 %v565, %v568
    %vm570 = vweird.f32 %v519
    %vm571 = vweird.f32 %v565
    %vm572 = vmor %vm570, %vm571
    %v573 = vsel %vm572, %v565, %v569
    %v574 = vand.u32 2147483647, %v519
    %vm575 = vcmp.eq.f32.partialorder %v574, 8.507059e+37
    %v576 = vand.u32 %v519, 2147483648
    %v577 = vor.u32 1.1754944e-38, %v576
    %v578 = vsel %vm575, %v577, %v573
    %v579 = vmul.f32 %v500, %v578
    %v580 = vrcp.pop %v522
    %v581 = vmul.f32 %v522, %v580
    %v582 = vsub.f32 1.0, %v581
    %v583 = vmul.f32 %v580, %v582
    %v584 = vadd.f32 %v580, %v583
    %vm585 = vweird.f32 %v522
    %vm586 = vweird.f32 %v580
    %vm587 = vmor %vm585, %vm586
    %v588 = vsel %vm587, %v580, %v584
    %v589 = vand.u32 2147483647, %v522
    %vm590 = vcmp.eq.f32.partialorder %v589, 8.507059e+37
    %v591 = vand.u32 %v522, 2147483648
    %v592 = vor.u32 1.1754944e-38, %v591
    %v593 = vsel %vm590, %v592, %v588
    %v594 = vmul.f32 %v502, %v593
    %v595 = vrcp.pop %v525
    %v596 = vmul.f32 %v525, %v595
    %v597 = vsub.f32 1.0, %v596
    %v598 = vmul.f32 %v595, %v597
    %v599 = vadd.f32 %v595, %v598
    %vm600 = vweird.f32 %v525
    %vm601 = vweird.f32 %v595
    %vm602 = vmor %vm600, %vm601
    %v603 = vsel %vm602, %v595, %v599
    %v604 = vand.u32 2147483647, %v525
    %vm605 = vcmp.eq.f32.partialorder %v604, 8.507059e+37
    %v606 = vand.u32 %v525, 2147483648
    %v607 = vor.u32 1.1754944e-38, %v606
    %v608 = vsel %vm605, %v607, %v603
    %v609 = vmul.f32 %v504, %v608
    %v610 = vrcp.pop %v528
    %v611 = vmul.f32 %v528, %v610
    %v612 = vsub.f32 1.0, %v611
    %v613 = vmul.f32 %v610, %v612
    %v614 = vadd.f32 %v610, %v613
    %vm615 = vweird.f32 %v528
    %vm616 = vweird.f32 %v610
    %vm617 = vmor %vm615, %vm616
    %v618 = vsel %vm617, %v610, %v614
    %v619 = vand.u32 2147483647, %v528
    %vm620 = vcmp.eq.f32.partialorder %v619, 8.507059e+37
    %v621 = vand.u32 %v528, 2147483648
    %v622 = vor.u32 1.1754944e-38, %v621
    %v623 = vsel %vm620, %v622, %v618
    %v624 = vmul.f32 %v506, %v623
    %v625 = vrcp.pop %v531
    %v626 = vmul.f32 %v531, %v625
    %v627 = vsub.f32 1.0, %v626
    %v628 = vmul.f32 %v625, %v627
    %v629 = vadd.f32 %v625, %v628
    %vm630 = vweird.f32 %v531
    %vm631 = vweird.f32 %v625
    %vm632 = vmor %vm630, %vm631
    %v633 = vsel %vm632, %v625, %v629
    %v634 = vand.u32 2147483647, %v531
    %vm635 = vcmp.eq.f32.partialorder %v634, 8.507059e+37
    %v636 = vand.u32 %v531, 2147483648
    %v637 = vor.u32 1.1754944e-38, %v636
    %v638 = vsel %vm635, %v637, %v633
    %v639 = vmul.f32 %v508, %v638
    %v640 = vrcp.pop %v534
    %v641 = vmul.f32 %v534, %v640
    %v642 = vsub.f32 1.0, %v641
    %v643 = vmul.f32 %v640, %v642
    %v644 = vadd.f32 %v640, %v643
    %vm645 = vweird.f32 %v534
    %vm646 = vweird.f32 %v640
    %vm647 = vmor %vm645, %vm646
    %v648 = vsel %vm647, %v640, %v644
    %v649 = vand.u32 2147483647, %v534
    %vm650 = vcmp.eq.f32.partialorder %v649, 8.507059e+37
    %v651 = vand.u32 %v534, 2147483648
    %v652 = vor.u32 1.1754944e-38, %v651
    %v653 = vsel %vm650, %v652, %v648
    %v654 = vmul.f32 %v510, %v653
    %655 = vrot.lane.b32.xlu0 %v101, 112
    %v656 = vpop.permute.xlu0 %655
    %v659 = vsel %vm249, %v549, 0
    %661 = vmatpush.msra.mxu0 0.0
    %662 = vmatpush.msra.mxu0 0.0
    %663 = vmatpush.msra.mxu0 0.0
    %664 = vmatpush.msra.mxu0 0.0
    %665 = vmatpush.msra.mxu0 0.0
    %666 = vmatpush.msra.mxu0 0.0
    %667 = vmatpush.msra.mxu0 0.0
    %668 = vmatpush.msra.mxu0 0.0
    %669 = vmatpush.msra.mxu0 0.0
    %670 = vmatpush.msra.mxu0 0.0
    %671 = vmatpush.msra.mxu0 0.0
    %672 = vmatpush.msra.mxu0 0.0
    %673 = vmatpush.msra.mxu0 0.0
    %674 = vmatpush.msra.mxu0 0.0
    %675 = vmatpush.msra.mxu0 0.0
    %676 = vmatpush.msra.mxu0 %v656
    %677 = vmatmul.f32.gmra.mxu0 %v659
    %v678 = vpop.f32.mrf.mxu0
    %v679 = vadd.f32 0.0, %v678
    %680 = vdwg.mxu0
    %681 = vrot.lane.b32.xlu0 %v121, 112
    %v682 = vpop.permute.xlu0 %681
    %v685 = vsel %vm249, %v564, 0
    %687 = vmatpush.msra.mxu0 0.0
    %688 = vmatpush.msra.mxu0 0.0
    %689 = vmatpush.msra.mxu0 0.0
    %690 = vmatpush.msra.mxu0 0.0
    %691 = vmatpush.msra.mxu0 0.0
    %692 = vmatpush.msra.mxu0 0.0
    %693 = vmatpush.msra.mxu0 0.0
    %694 = vmatpush.msra.mxu0 0.0
    %695 = vmatpush.msra.mxu0 0.0
    %696 = vmatpush.msra.mxu0 0.0
    %697 = vmatpush.msra.mxu0 0.0
    %698 = vmatpush.msra.mxu0 0.0
    %699 = vmatpush.msra.mxu0 0.0
    %700 = vmatpush.msra.mxu0 0.0
    %701 = vmatpush.msra.mxu0 0.0
    %702 = vmatpush.msra.mxu0 %v682
    %703 = vmatmul.f32.gmra.mxu0 %v685
    %v704 = vpop.f32.mrf.mxu0
    %v705 = vadd.f32 0.0, %v704
    %706 = vdwg.mxu0
    %707 = vrot.lane.b32.xlu0 %v141, 112
    %v708 = vpop.permute.xlu0 %707
    %v711 = vsel %vm249, %v579, 0
    %713 = vmatpush.msra.mxu0 0.0
    %714 = vmatpush.msra.mxu0 0.0
    %715 = vmatpush.msra.mxu0 0.0
    %716 = vmatpush.msra.mxu0 0.0
    %717 = vmatpush.msra.mxu0 0.0
    %718 = vmatpush.msra.mxu0 0.0
    %719 = vmatpush.msra.mxu0 0.0
    %720 = vmatpush.msra.mxu0 0.0
    %721 = vmatpush.msra.mxu0 0.0
    %722 = vmatpush.msra.mxu0 0.0
    %723 = vmatpush.msra.mxu0 0.0
    %724 = vmatpush.msra.mxu0 0.0
    %725 = vmatpush.msra.mxu0 0.0
    %726 = vmatpush.msra.mxu0 0.0
    %727 = vmatpush.msra.mxu0 0.0
    %728 = vmatpush.msra.mxu0 %v708
    %729 = vmatmul.f32.gmra.mxu0 %v711
    %v730 = vpop.f32.mrf.mxu0
    %v731 = vadd.f32 0.0, %v730
    %732 = vdwg.mxu0
    %733 = vrot.lane.b32.xlu0 %v161, 112
    %v734 = vpop.permute.xlu0 %733
    %v737 = vsel %vm249, %v594, 0
    %739 = vmatpush.msra.mxu0 0.0
    %740 = vmatpush.msra.mxu0 0.0
    %741 = vmatpush.msra.mxu0 0.0
    %742 = vmatpush.msra.mxu0 0.0
    %743 = vmatpush.msra.mxu0 0.0
    %744 = vmatpush.msra.mxu0 0.0
    %745 = vmatpush.msra.mxu0 0.0
    %746 = vmatpush.msra.mxu0 0.0
    %747 = vmatpush.msra.mxu0 0.0
    %748 = vmatpush.msra.mxu0 0.0
    %749 = vmatpush.msra.mxu0 0.0
    %750 = vmatpush.msra.mxu0 0.0
    %751 = vmatpush.msra.mxu0 0.0
    %752 = vmatpush.msra.mxu0 0.0
    %753 = vmatpush.msra.mxu0 0.0
    %754 = vmatpush.msra.mxu0 %v734
    %755 = vmatmul.f32.gmra.mxu0 %v737
    %v756 = vpop.f32.mrf.mxu0
    %v757 = vadd.f32 0.0, %v756
    %758 = vdwg.mxu0
    %759 = vrot.lane.b32.xlu0 %v184, 112
    %v760 = vpop.permute.xlu0 %759
    %v763 = vsel %vm249, %v609, 0
    %765 = vmatpush.msra.mxu0 0.0
    %766 = vmatpush.msra.mxu0 0.0
    %767 = vmatpush.msra.mxu0 0.0
    %768 = vmatpush.msra.mxu0 0.0
    %769 = vmatpush.msra.mxu0 0.0
    %770 = vmatpush.msra.mxu0 0.0
    %771 = vmatpush.msra.mxu0 0.0
    %772 = vmatpush.msra.mxu0 0.0
    %773 = vmatpush.msra.mxu0 0.0
    %774 = vmatpush.msra.mxu0 0.0
    %775 = vmatpush.msra.mxu0 0.0
    %776 = vmatpush.msra.mxu0 0.0
    %777 = vmatpush.msra.mxu0 0.0
    %778 = vmatpush.msra.mxu0 0.0
    %779 = vmatpush.msra.mxu0 0.0
    %780 = vmatpush.msra.mxu0 %v760
    %781 = vmatmul.f32.gmra.mxu0 %v763
    %v782 = vpop.f32.mrf.mxu0
    %v783 = vadd.f32 0.0, %v782
    %784 = vdwg.mxu0
    %785 = vrot.lane.b32.xlu0 %v204, 112
    %v786 = vpop.permute.xlu0 %785
    %v789 = vsel %vm249, %v624, 0
    %791 = vmatpush.msra.mxu0 0.0
    %792 = vmatpush.msra.mxu0 0.0
    %793 = vmatpush.msra.mxu0 0.0
    %794 = vmatpush.msra.mxu0 0.0
    %795 = vmatpush.msra.mxu0 0.0
    %796 = vmatpush.msra.mxu0 0.0
    %797 = vmatpush.msra.mxu0 0.0
    %798 = vmatpush.msra.mxu0 0.0
    %799 = vmatpush.msra.mxu0 0.0
    %800 = vmatpush.msra.mxu0 0.0
    %801 = vmatpush.msra.mxu0 0.0
    %802 = vmatpush.msra.mxu0 0.0
    %803 = vmatpush.msra.mxu0 0.0
    %804 = vmatpush.msra.mxu0 0.0
    %805 = vmatpush.msra.mxu0 0.0
    %806 = vmatpush.msra.mxu0 %v786
    %807 = vmatmul.f32.gmra.mxu0 %v789
    %v808 = vpop.f32.mrf.mxu0
    %v809 = vadd.f32 0.0, %v808
    %810 = vdwg.mxu0
    %811 = vrot.lane.b32.xlu0 %v224, 112
    %v812 = vpop.permute.xlu0 %811
    %v815 = vsel %vm249, %v639, 0
    %817 = vmatpush.msra.mxu0 0.0
    %818 = vmatpush.msra.mxu0 0.0
    %819 = vmatpush.msra.mxu0 0.0
    %820 = vmatpush.msra.mxu0 0.0
    %821 = vmatpush.msra.mxu0 0.0
    %822 = vmatpush.msra.mxu0 0.0
    %823 = vmatpush.msra.mxu0 0.0
    %824 = vmatpush.msra.mxu0 0.0
    %825 = vmatpush.msra.mxu0 0.0
    %826 = vmatpush.msra.mxu0 0.0
    %827 = vmatpush.msra.mxu0 0.0
    %828 = vmatpush.msra.mxu0 0.0
    %829 = vmatpush.msra.mxu0 0.0
    %830 = vmatpush.msra.mxu0 0.0
    %831 = vmatpush.msra.mxu0 0.0
    %832 = vmatpush.msra.mxu0 %v812
    %833 = vmatmul.f32.gmra.mxu0 %v815
    %v834 = vpop.f32.mrf.mxu0
    %v835 = vadd.f32 0.0, %v834
    %836 = vdwg.mxu0
    %837 = vrot.lane.b32.xlu0 %v244, 112
    %v838 = vpop.permute.xlu0 %837
    %v841 = vsel %vm249, %v654, 0
    %843 = vmatpush.msra.mxu0 0.0
    %844 = vmatpush.msra.mxu0 0.0
    %845 = vmatpush.msra.mxu0 0.0
    %846 = vmatpush.msra.mxu0 0.0
    %847 = vmatpush.msra.mxu0 0.0
    %848 = vmatpush.msra.mxu0 0.0
    %849 = vmatpush.msra.mxu0 0.0
    %850 = vmatpush.msra.mxu0 0.0
    %851 = vmatpush.msra.mxu0 0.0
    %852 = vmatpush.msra.mxu0 0.0
    %853 = vmatpush.msra.mxu0 0.0
    %854 = vmatpush.msra.mxu0 0.0
    %855 = vmatpush.msra.mxu0 0.0
    %856 = vmatpush.msra.mxu0 0.0
    %857 = vmatpush.msra.mxu0 0.0
    %858 = vmatpush.msra.mxu0 %v838
    %859 = vmatmul.f32.gmra.mxu0 %v841
    %v860 = vpop.f32.mrf.mxu0
    %v861 = vadd.f32 0.0, %v860
    %862 = vdwg.mxu0
    %v863 = vld [vmem:[%s3] sm:$0xff]
    %v864 = vld [vmem:[%s3 + $0x8] sm:$0xff]
    %v865 = vld [vmem:[%s3 + $0x10] sm:$0xff]
    %v866 = vld [vmem:[%s3 + $0x18] sm:$0xff]
    %v868 = vsel %vm249, %v679, 0
    %870 = vmatpush.msra.mxu0 0.0
    %871 = vmatpush.msra.mxu0 0.0
    %872 = vmatpush.msra.mxu0 0.0
    %873 = vmatpush.msra.mxu0 0.0
    %874 = vmatpush.msra.mxu0 0.0
    %875 = vmatpush.msra.mxu0 0.0
    %876 = vmatpush.msra.mxu0 0.0
    %877 = vmatpush.msra.mxu0 0.0
    %878 = vmatpush.msra.mxu0 0.0
    %879 = vmatpush.msra.mxu0 0.0
    %880 = vmatpush.msra.mxu0 0.0
    %881 = vmatpush.msra.mxu0 0.0
    %882 = vmatpush.msra.mxu0 0.0
    %883 = vmatpush.msra.mxu0 0.0
    %884 = vmatpush.msra.mxu0 0.0
    %885 = vmatpush.msra.mxu0 %v863
    %886 = vmatmul.f32.gmra.mxu0 %v868
    %v887 = vpop.f32.mrf.mxu0
    %v888 = vadd.f32 0.0, %v887
    %889 = vdwg.mxu0
    %v891 = vsel %vm249, %v705, 0
    %893 = vmatpush.msra.mxu0 0.0
    %894 = vmatpush.msra.mxu0 0.0
    %895 = vmatpush.msra.mxu0 0.0
    %896 = vmatpush.msra.mxu0 0.0
    %897 = vmatpush.msra.mxu0 0.0
    %898 = vmatpush.msra.mxu0 0.0
    %899 = vmatpush.msra.mxu0 0.0
    %900 = vmatpush.msra.mxu0 0.0
    %901 = vmatpush.msra.mxu0 0.0
    %902 = vmatpush.msra.mxu0 0.0
    %903 = vmatpush.msra.mxu0 0.0
    %904 = vmatpush.msra.mxu0 0.0
    %905 = vmatpush.msra.mxu0 0.0
    %906 = vmatpush.msra.mxu0 0.0
    %907 = vmatpush.msra.mxu0 0.0
    %908 = vmatpush.msra.mxu0 %v864
    %909 = vmatmul.f32.gmra.mxu0 %v891
    %v910 = vpop.f32.mrf.mxu0
    %v911 = vadd.f32 0.0, %v910
    %912 = vdwg.mxu0
    %v914 = vsel %vm249, %v731, 0
    %916 = vmatpush.msra.mxu0 0.0
    %917 = vmatpush.msra.mxu0 0.0
    %918 = vmatpush.msra.mxu0 0.0
    %919 = vmatpush.msra.mxu0 0.0
    %920 = vmatpush.msra.mxu0 0.0
    %921 = vmatpush.msra.mxu0 0.0
    %922 = vmatpush.msra.mxu0 0.0
    %923 = vmatpush.msra.mxu0 0.0
    %924 = vmatpush.msra.mxu0 0.0
    %925 = vmatpush.msra.mxu0 0.0
    %926 = vmatpush.msra.mxu0 0.0
    %927 = vmatpush.msra.mxu0 0.0
    %928 = vmatpush.msra.mxu0 0.0
    %929 = vmatpush.msra.mxu0 0.0
    %930 = vmatpush.msra.mxu0 0.0
    %931 = vmatpush.msra.mxu0 %v865
    %932 = vmatmul.f32.gmra.mxu0 %v914
    %v933 = vpop.f32.mrf.mxu0
    %v934 = vadd.f32 0.0, %v933
    %935 = vdwg.mxu0
    %v937 = vsel %vm249, %v757, 0
    %939 = vmatpush.msra.mxu0 0.0
    %940 = vmatpush.msra.mxu0 0.0
    %941 = vmatpush.msra.mxu0 0.0
    %942 = vmatpush.msra.mxu0 0.0
    %943 = vmatpush.msra.mxu0 0.0
    %944 = vmatpush.msra.mxu0 0.0
    %945 = vmatpush.msra.mxu0 0.0
    %946 = vmatpush.msra.mxu0 0.0
    %947 = vmatpush.msra.mxu0 0.0
    %948 = vmatpush.msra.mxu0 0.0
    %949 = vmatpush.msra.mxu0 0.0
    %950 = vmatpush.msra.mxu0 0.0
    %951 = vmatpush.msra.mxu0 0.0
    %952 = vmatpush.msra.mxu0 0.0
    %953 = vmatpush.msra.mxu0 0.0
    %954 = vmatpush.msra.mxu0 %v866
    %955 = vmatmul.f32.gmra.mxu0 %v937
    %v956 = vpop.f32.mrf.mxu0
    %v957 = vadd.f32 0.0, %v956
    %958 = vdwg.mxu0
    %v960 = vsel %vm249, %v783, 0
    %962 = vmatpush.msra.mxu0 0.0
    %963 = vmatpush.msra.mxu0 0.0
    %964 = vmatpush.msra.mxu0 0.0
    %965 = vmatpush.msra.mxu0 0.0
    %966 = vmatpush.msra.mxu0 0.0
    %967 = vmatpush.msra.mxu0 0.0
    %968 = vmatpush.msra.mxu0 0.0
    %969 = vmatpush.msra.mxu0 0.0
    %970 = vmatpush.msra.mxu0 0.0
    %971 = vmatpush.msra.mxu0 0.0
    %972 = vmatpush.msra.mxu0 0.0
    %973 = vmatpush.msra.mxu0 0.0
    %974 = vmatpush.msra.mxu0 0.0
    %975 = vmatpush.msra.mxu0 0.0
    %976 = vmatpush.msra.mxu0 0.0
    %977 = vmatpush.msra.mxu0 %v863
    %978 = vmatmul.f32.gmra.mxu0 %v960
    %v979 = vpop.f32.mrf.mxu0
    %v980 = vadd.f32 0.0, %v979
    %981 = vdwg.mxu0
    %v983 = vsel %vm249, %v809, 0
    %985 = vmatpush.msra.mxu0 0.0
    %986 = vmatpush.msra.mxu0 0.0
    %987 = vmatpush.msra.mxu0 0.0
    %988 = vmatpush.msra.mxu0 0.0
    %989 = vmatpush.msra.mxu0 0.0
    %990 = vmatpush.msra.mxu0 0.0
    %991 = vmatpush.msra.mxu0 0.0
    %992 = vmatpush.msra.mxu0 0.0
    %993 = vmatpush.msra.mxu0 0.0
    %994 = vmatpush.msra.mxu0 0.0
    %995 = vmatpush.msra.mxu0 0.0
    %996 = vmatpush.msra.mxu0 0.0
    %997 = vmatpush.msra.mxu0 0.0
    %998 = vmatpush.msra.mxu0 0.0
    %999 = vmatpush.msra.mxu0 0.0
    %1000 = vmatpush.msra.mxu0 %v864
    %1001 = vmatmul.f32.gmra.mxu0 %v983
    %v1002 = vpop.f32.mrf.mxu0
    %v1003 = vadd.f32 0.0, %v1002
    %1004 = vdwg.mxu0
    %v1006 = vsel %vm249, %v835, 0
    %1008 = vmatpush.msra.mxu0 0.0
    %1009 = vmatpush.msra.mxu0 0.0
    %1010 = vmatpush.msra.mxu0 0.0
    %1011 = vmatpush.msra.mxu0 0.0
    %1012 = vmatpush.msra.mxu0 0.0
    %1013 = vmatpush.msra.mxu0 0.0
    %1014 = vmatpush.msra.mxu0 0.0
    %1015 = vmatpush.msra.mxu0 0.0
    %1016 = vmatpush.msra.mxu0 0.0
    %1017 = vmatpush.msra.mxu0 0.0
    %1018 = vmatpush.msra.mxu0 0.0
    %1019 = vmatpush.msra.mxu0 0.0
    %1020 = vmatpush.msra.mxu0 0.0
    %1021 = vmatpush.msra.mxu0 0.0
    %1022 = vmatpush.msra.mxu0 0.0
    %1023 = vmatpush.msra.mxu0 %v865
    %1024 = vmatmul.f32.gmra.mxu0 %v1006
    %v1025 = vpop.f32.mrf.mxu0
    %v1026 = vadd.f32 0.0, %v1025
    %1027 = vdwg.mxu0
    %v1029 = vsel %vm249, %v861, 0
    %1031 = vmatpush.msra.mxu0 0.0
    %1032 = vmatpush.msra.mxu0 0.0
    %1033 = vmatpush.msra.mxu0 0.0
    %1034 = vmatpush.msra.mxu0 0.0
    %1035 = vmatpush.msra.mxu0 0.0
    %1036 = vmatpush.msra.mxu0 0.0
    %1037 = vmatpush.msra.mxu0 0.0
    %1038 = vmatpush.msra.mxu0 0.0
    %1039 = vmatpush.msra.mxu0 0.0
    %1040 = vmatpush.msra.mxu0 0.0
    %1041 = vmatpush.msra.mxu0 0.0
    %1042 = vmatpush.msra.mxu0 0.0
    %1043 = vmatpush.msra.mxu0 0.0
    %1044 = vmatpush.msra.mxu0 0.0
    %1045 = vmatpush.msra.mxu0 0.0
    %1046 = vmatpush.msra.mxu0 %v866
    %1047 = vmatmul.f32.gmra.mxu0 %v1029
    %v1048 = vpop.f32.mrf.mxu0
    %v1049 = vadd.f32 0.0, %v1048
    %1050 = vdwg.mxu0
    %v1051 = vsel %vm79, %v888, 0.0
    %v1052 = vsel %vm79, %v911, 0.0
    %v1053 = vadd.f32 %v1051, %v1052
    %v1054 = vsel %vm79, %v934, 0.0
    %v1055 = vadd.f32 %v1053, %v1054
    %v1056 = vsel %vm79, %v957, 0.0
    %v1057 = vadd.f32 %v1055, %v1056
    %v1058 = vsel %vm79, %v980, 0.0
    %v1059 = vsel %vm79, %v1003, 0.0
    %v1060 = vadd.f32 %v1058, %v1059
    %v1061 = vsel %vm79, %v1026, 0.0
    %v1062 = vadd.f32 %v1060, %v1061
    %v1063 = vsel %vm79, %v1049, 0.0
    %v1064 = vadd.f32 %v1062, %v1063
    %v1065 = vld [vmem:[%s4] sm:$0x1]
    %v1067 = vperm.slane %v1065, 0
    %v1069 = vadd.f32 %v1057, %v1067
    %v1070 = vadd.f32 %v1064, %v1067
    %v1071 = vadd.f32 %v45, %v1069
    %v1072 = vadd.f32 %v46, %v1070
    %v1073 = vld [vmem:[%s5] sm:$0x1]
    %v1074 = vld [vmem:[%s6] sm:$0x1]
    %v1075 = vsel %vm79, %v1071, 0.0
    %1076 = vadd.xlane.f32.xlu0 %v1075
    %v1077 = vpop.xlane.xlu0 %1076
    %v1078 = vsel %vm79, %v1072, 0.0
    %1079 = vadd.xlane.f32.xlu0 %v1078
    %v1080 = vpop.xlane.xlu0 %1079
    %v1081 = vrcp.pop 32.0
    %v1082 = vmul.f32 32.0, %v1081
    %v1083 = vsub.f32 1.0, %v1082
    %v1084 = vmul.f32 %v1081, %v1083
    %v1085 = vadd.f32 %v1081, %v1084
    %vm1086 = vweird.f32 %v1081
    %v1087 = vsel %vm1086, %v1081, %v1085
    %v1088 = vmul.f32 %v1077, %v1087
    %v1089 = vmul.f32 %v1080, %v1087
    %v1090 = vsub.f32 %v1071, %v1088
    %v1091 = vsub.f32 %v1072, %v1089
    %v1092 = vmul.f32 %v1090, %v1090
    %v1093 = vmul.f32 %v1091, %v1091
    %v1094 = vsel %vm79, %v1092, 0.0
    %1095 = vadd.xlane.f32.xlu0 %v1094
    %v1096 = vpop.xlane.xlu0 %1095
    %v1097 = vsel %vm79, %v1093, 0.0
    %1098 = vadd.xlane.f32.xlu0 %v1097
    %v1099 = vpop.xlane.xlu0 %1098
    %v1100 = vmul.f32 %v1096, %v1087
    %v1101 = vmul.f32 %v1099, %v1087
    %v1102 = vadd.f32 %v1100, 1e-05
    %v1103 = vadd.f32 %v1101, 1e-05
    %v1104 = vrsqrt.pop %v1102
    %v1105 = vmul.f32 %v1104, %v1102
    %v1106 = vmul.f32 %v1105, %v1104
    %v1107 = vmul.f32 0.5, %v1106
    %v1108 = vsub.f32 1.5, %v1107
    %v1109 = vmul.f32 %v1104, %v1108
    %vm1110 = vweird.f32 %v1102
    %vm1111 = vweird.f32 %v1104
    %vm1112 = vmor %vm1110, %vm1111
    %v1113 = vsel %vm1112, %v1104, %v1109
    %v1114 = vrsqrt.pop %v1103
    %v1115 = vmul.f32 %v1114, %v1103
    %v1116 = vmul.f32 %v1115, %v1114
    %v1117 = vmul.f32 0.5, %v1116
    %v1118 = vsub.f32 1.5, %v1117
    %v1119 = vmul.f32 %v1114, %v1118
    %vm1120 = vweird.f32 %v1103
    %vm1121 = vweird.f32 %v1114
    %vm1122 = vmor %vm1120, %vm1121
    %v1123 = vsel %vm1122, %v1114, %v1119
    %v1124 = vmul.f32 %v1090, %v1113
    %v1125 = vmul.f32 %v1091, %v1123
    %v1127 = vperm.slane %v1073, 0
    %v1129 = vmul.f32 %v1124, %v1127
    %v1130 = vmul.f32 %v1125, %v1127
    %v1132 = vperm.slane %v1074, 0
    %v1134 = vadd.f32 %v1129, %v1132
    %v1135 = vadd.f32 %v1130, %v1132
    %v1136 = vld [vmem:[%s7] sm:$0xff]
    %v1137 = vld [vmem:[%s7 + $0x8] sm:$0xff]
    %v1138 = vld [vmem:[%s7 + $0x10] sm:$0xff]
    %v1139 = vld [vmem:[%s7 + $0x18] sm:$0xff]
    %v1140 = vld [vmem:[%s8] sm:$0x1]
    %v1142 = vperm.slane %v1140, 0
    %v1145 = vsel %vm79, %v1134, 0
    %v1148 = vsel %vm79, %v1135, 0
    %1150 = vmatpush.msra.mxu0 0.0
    %1151 = vmatpush.msra.mxu0 0.0
    %1152 = vmatpush.msra.mxu0 0.0
    %1153 = vmatpush.msra.mxu0 0.0
    %1154 = vmatpush.msra.mxu0 0.0
    %1155 = vmatpush.msra.mxu0 0.0
    %1156 = vmatpush.msra.mxu0 0.0
    %1157 = vmatpush.msra.mxu0 0.0
    %1158 = vmatpush.msra.mxu0 0.0
    %1159 = vmatpush.msra.mxu0 0.0
    %1160 = vmatpush.msra.mxu0 0.0
    %1161 = vmatpush.msra.mxu0 0.0
    %1162 = vmatpush.msra.mxu0 %v1139
    %1163 = vmatpush.msra.mxu0 %v1138
    %1164 = vmatpush.msra.mxu0 %v1137
    %1165 = vmatpush.msra.mxu0 %v1136
    %1166 = vmatmul.f32.gmra.mxu0 %v1145
    %v1167 = vpop.f32.mrf.mxu0
    %v1168 = vadd.f32 %v1142, %v1167
    %1169 = vmatmul.f32.gmra.mxu0 %v1148
    %v1170 = vpop.f32.mrf.mxu0
    %v1171 = vadd.f32 %v1142, %v1170
    %1172 = vdwg.mxu0
    %v1173 = vmax.f32 %v1168, 0.0
    %v1174 = vmax.f32 %v1171, 0.0
    %v1175 = vld [vmem:[%s9] sm:$0xff]
    %v1176 = vld [vmem:[%s9 + $0x8] sm:$0xff]
    %v1177 = vld [vmem:[%s9 + $0x10] sm:$0xff]
    %v1178 = vld [vmem:[%s9 + $0x18] sm:$0xff]
    %v1179 = vld [vmem:[%s9 + $0x20] sm:$0xff]
    %v1180 = vld [vmem:[%s9 + $0x28] sm:$0xff]
    %v1181 = vld [vmem:[%s9 + $0x30] sm:$0xff]
    %v1182 = vld [vmem:[%s9 + $0x38] sm:$0xff]
    %v1183 = vld [vmem:[%s9 + $0x40] sm:$0xff]
    %v1184 = vld [vmem:[%s9 + $0x48] sm:$0xff]
    %v1185 = vld [vmem:[%s9 + $0x50] sm:$0xff]
    %v1186 = vld [vmem:[%s9 + $0x58] sm:$0xff]
    %v1187 = vld [vmem:[%s9 + $0x60] sm:$0xff]
    %v1188 = vld [vmem:[%s9 + $0x68] sm:$0xff]
    %v1189 = vld [vmem:[%s9 + $0x70] sm:$0xff]
    %v1190 = vld [vmem:[%s9 + $0x78] sm:$0xff]
    %v1191 = vld [vmem:[%s10] sm:$0x1]
    %v1193 = vperm.slane %v1191, 0
    %1195 = vmatpush.msra.mxu0 %v1190
    %1196 = vmatpush.msra.mxu0 %v1189
    %1197 = vmatpush.msra.mxu0 %v1188
    %1198 = vmatpush.msra.mxu0 %v1187
    %1199 = vmatpush.msra.mxu0 %v1186
    %1200 = vmatpush.msra.mxu0 %v1185
    %1201 = vmatpush.msra.mxu0 %v1184
    %1202 = vmatpush.msra.mxu0 %v1183
    %1203 = vmatpush.msra.mxu0 %v1182
    %1204 = vmatpush.msra.mxu0 %v1181
    %1205 = vmatpush.msra.mxu0 %v1180
    %1206 = vmatpush.msra.mxu0 %v1179
    %1207 = vmatpush.msra.mxu0 %v1178
    %1208 = vmatpush.msra.mxu0 %v1177
    %1209 = vmatpush.msra.mxu0 %v1176
    %1210 = vmatpush.msra.mxu0 %v1175
    %1211 = vmatmul.f32.gmra.mxu0 %v1173
    %v1212 = vpop.f32.mrf.mxu0
    %v1213 = vadd.f32 %v1193, %v1212
    %1214 = vmatmul.f32.gmra.mxu0 %v1174
    %v1215 = vpop.f32.mrf.mxu0
    %v1216 = vadd.f32 %v1193, %v1215
    %1217 = vdwg.mxu0
    %v1218 = vadd.f32 %v1134, %v1213
    %v1219 = vadd.f32 %v1135, %v1216
    %v1220 = vld [vmem:[%s11] sm:$0x1]
    %v1221 = vld [vmem:[%s12] sm:$0x1]
    %v1222 = vsel %vm79, %v1218, 0.0
    %1223 = vadd.xlane.f32.xlu0 %v1222
    %v1224 = vpop.xlane.xlu0 %1223
    %v1225 = vsel %vm79, %v1219, 0.0
    %1226 = vadd.xlane.f32.xlu0 %v1225
    %v1227 = vpop.xlane.xlu0 %1226
    %v1228 = vmul.f32 %v1224, %v1087
    %v1229 = vmul.f32 %v1227, %v1087
    %v1230 = vsub.f32 %v1218, %v1228
    %v1231 = vsub.f32 %v1219, %v1229
    %v1232 = vmul.f32 %v1230, %v1230
    %v1233 = vmul.f32 %v1231, %v1231
    %v1234 = vsel %vm79, %v1232, 0.0
    %1235 = vadd.xlane.f32.xlu0 %v1234
    %v1236 = vpop.xlane.xlu0 %1235
    %v1237 = vsel %vm79, %v1233, 0.0
    %1238 = vadd.xlane.f32.xlu0 %v1237
    %v1239 = vpop.xlane.xlu0 %1238
    %v1240 = vmul.f32 %v1236, %v1087
    %v1241 = vmul.f32 %v1239, %v1087
    %v1242 = vadd.f32 %v1240, 1e-05
    %v1243 = vadd.f32 %v1241, 1e-05
    %v1244 = vrsqrt.pop %v1242
    %v1245 = vmul.f32 %v1244, %v1242
    %v1246 = vmul.f32 %v1245, %v1244
    %v1247 = vmul.f32 0.5, %v1246
    %v1248 = vsub.f32 1.5, %v1247
    %v1249 = vmul.f32 %v1244, %v1248
    %vm1250 = vweird.f32 %v1242
    %vm1251 = vweird.f32 %v1244
    %vm1252 = vmor %vm1250, %vm1251
    %v1253 = vsel %vm1252, %v1244, %v1249
    %v1254 = vrsqrt.pop %v1243
    %v1255 = vmul.f32 %v1254, %v1243
    %v1256 = vmul.f32 %v1255, %v1254
    %v1257 = vmul.f32 0.5, %v1256
    %v1258 = vsub.f32 1.5, %v1257
    %v1259 = vmul.f32 %v1254, %v1258
    %vm1260 = vweird.f32 %v1243
    %vm1261 = vweird.f32 %v1254
    %vm1262 = vmor %vm1260, %vm1261
    %v1263 = vsel %vm1262, %v1254, %v1259
    %v1264 = vmul.f32 %v1230, %v1253
    %v1265 = vmul.f32 %v1231, %v1263
    %v1267 = vperm.slane %v1220, 0
    %v1269 = vmul.f32 %v1264, %v1267
    %v1270 = vmul.f32 %v1265, %v1267
    %v1272 = vperm.slane %v1221, 0
    %v1274 = vadd.f32 %v1269, %v1272
    %v1275 = vadd.f32 %v1270, %v1272
    %1276 = vst.msk [vmem:[#allocation2] sm:$0xff] %vm79, %v1274
    %1277 = vst.msk [vmem:[#allocation2 + $0x8] sm:$0xff] %vm79, %v1275
    // Predicated region
    $region54: #{tpu_custom_call.1} parent=1 // pred_check
      _
    $region55: #{tpu_custom_call.1} parent=1 // pred_check_branch
      %1279 = sbr.rel (0) target = $region57
    $region56: #{tpu_custom_call.1} parent=1 // pred_region
      %1281 = vsyncadd [#allocation3], 0
      %s1282 = sshll.u32 [#allocation2], 4
      %s1283 = int_to_ptr.vmem [resolvable:$true] %s1282
      %s1284 = sshll.u32 %s13, 4
      %s1285 = int_to_ptr.hbm [resolvable:$true] %s1284
      %1290 = dma.vmem_to_hbm [thread:$0]  %s1283, 256, %s1285, [#allocation3], 128, 128, 8
    $region57: #{tpu_custom_call.1} parent=1 // pred_fallthru
      _
    // Predicated region
    $region58: #{tpu_custom_call.1} parent=1 // pred_check
      _
    $region59: #{tpu_custom_call.1} parent=1 // pred_check_branch
      %1292 = sbr.rel (0) target = $region61
    $region60: #{tpu_custom_call.1} parent=1 // pred_region
      %1294 = dma.done [#allocation3], 256
    $region61: #{tpu_custom_call.1} parent=1 // pred_fallthru
      _
    %1295 = vsyncpa [#allocation3], 1

</llo_original>
